<compile_context>
chip_gen: v6e
topology: v6e:2x2x1
jax: 0.10.0
libtpu: 0.0.40
codegen_flags: <defaults>
</compile_context>

<pallas_src>
import jax
import jax.numpy as jnp
from jax.experimental import pallas as pl
from jax.experimental.pallas import tpu as pltpu


def _round_up(x, m):
    return (x + m - 1) // m * m


def _make_kernel(has_mask):
    def kernel(*refs):
        if has_mask:
            (q_ref, k_ref, v_ref, m_ref,
             a_ref, wv_ref, bv_ref, s_ref, e_ref, r_ref, o_ref) = refs
        else:
            (q_ref, k_ref, v_ref,
             a_ref, wv_ref, bv_ref, s_ref, e_ref, r_ref, o_ref) = refs
            m_ref = None

        f32 = jnp.float32

        # q_ref:  (Tm, Dq)      bf16  input queries
        # k_ref:  (Tm, N*Dk)    bf16  lane-dense keys (projection folded into A)
        # v_ref:  (Tm, N*Dv)    bf16  lane-dense values (un-projected)
        # m_ref:  (Tm, N)       int8  nonzero == masked (optional)
        # a_ref:  (Dq, N*Dk)    bf16  tile_N(Wq @ Wk^T * 1/sqrt(O))
        # wv_ref: (N*Dv, N*O)   bf16  blockdiag(Wv x N)
        # bv_ref: (1, N*O)      f32   tiled value bias
        # s_ref:  (N*Dk, N)     bf16  per-candidate group-sum selector
        # e_ref:  (N, N*O)      f32   attn-weight broadcast selector
        # r_ref:  (N*O, O)      bf16  candidate-fold selector
        # o_ref:  (Tm, O)

        # Folded q-side projection, pre-tiled so the MXU output is lane-dense:
        # qa[m, n*Dk + d] = (q_in @ Wq Wk^T * scale)[m, d]
        qa = jnp.dot(q_ref[...], a_ref[...], preferred_element_type=f32)     # (Tm, 256)

        # Per-candidate scaled dot products: elementwise product on the VPU,
        # group-sum over each Dk-lane block pushed to the MXU (S selector).
        prod = (k_ref[...].astype(f32) * qa).astype(jnp.bfloat16)            # (Tm, 256)
        scores = jnp.dot(prod, s_ref[...], preferred_element_type=f32)       # (Tm, N)

        if has_mask:
            # Replacement (not additive) to match torch masked_fill_ exactly,
            # including the all-masked-row -> uniform softmax case.
            scores = jnp.where(m_ref[...] != 0, f32(-1.0e9), scores)

        # Numerically-stable softmax over the N candidates.
        scores = scores - jnp.max(scores, axis=-1, keepdims=True)
        p = jnp.exp(scores)
        p = p * pl.reciprocal(jnp.sum(p, axis=-1, keepdims=True), approx=True)

        # Value projection on the lane-dense slab with block-diagonal weights,
        # then tanh (EUP).  Stays 256-wide: no padded 3-D intermediate.
        vp = jnp.tanh(
            jnp.dot(v_ref[...], wv_ref[...], preferred_element_type=f32)
            + bv_ref[...]
        )                                                                     # (Tm, 256)

        # Broadcast attention weights back to 256 lanes via the MXU (E),
        # weight the values, and fold the N candidates via the MXU (R).
        p_dense = jnp.dot(p, e_ref[...], preferred_element_type=f32)          # (Tm, 256)
        weighted = (p_dense * vp).astype(jnp.bfloat16)                        # (Tm, 256)
        out = jnp.dot(weighted, r_ref[...], preferred_element_type=f32)       # (Tm, O)

        o_ref[...] = out.astype(o_ref.dtype)

    return kernel


def scaled_soft_dot_attention(q_in, k_in, v_in, mask, wq, wk, wv, bv, *,
                              block_m=1024):
    """q_in: (B,L,Dq)  k_in/v_in: (B,L,N,D)  mask: (B,L,N) or None.
    wq/wk/wv are stored already transposed to (Din, O); bv: (O,)."""
    B, L, Dq = q_in.shape
    _, _, N, Dk = k_in.shape
    Dv = v_in.shape[-1]
    O = wq.shape[-1]
    M = B * L
    scale = 1.0 / (O ** 0.5)
    f32 = jnp.float32
    bf16 = jnp.bfloat16
    has_mask = mask is not None

    # ---- weight prep (exact algebraic folds, computed in f32) -------------
    a_mat = (wq.astype(f32) @ wk.astype(f32).T) * f32(scale)          # (Dq, Dk)
    a_tiled = jnp.tile(a_mat, (1, N)).astype(bf16)                    # (Dq, N*Dk)
    wv_blk = jnp.kron(jnp.eye(N, dtype=f32), wv.astype(f32)).astype(bf16)  # (N*Dv, N*O)
    bv_t = jnp.tile(bv.astype(f32), (N,)).reshape(1, N * O)           # (1, N*O)
    # Static 0/1 selectors (group-sum / broadcast / fold) for the MXU.
    s_sel = jnp.kron(jnp.eye(N, dtype=f32), jnp.ones((Dk, 1), f32)).astype(bf16)   # (N*Dk, N)
    e_sel = jnp.kron(jnp.eye(N, dtype=f32), jnp.ones((1, O), f32))                  # (N, N*O)
    r_sel = jnp.kron(jnp.ones((N, 1), f32), jnp.eye(O, dtype=f32)).astype(bf16)     # (N*O, O)

    # ---- row tiling --------------------------------------------------------
    SUB = 32  # sublane multiple covering f32(8)/bf16(16)/int8(32) packing
    bm = _round_up(min(block_m, M), SUB)
    # v7x: make sure the parallel axis has >= 2 steps so both TensorCores
    # get work (free on single-TC v5e/v6e).
    half = _round_up(pl.cdiv(M, 2), SUB)
    if pl.cdiv(M, bm) < 2 and half < bm:
        bm = half
    grid_m = pl.cdiv(M, bm)
    m_pad = grid_m * bm

    # ---- input prep: bf16, lane-dense flat layouts -------------------------
    qf = q_in.reshape(M, Dq).astype(bf16)
    kf = k_in.reshape(M, N * Dk).astype(bf16)          # [m, n*Dk + d]
    vf = v_in.reshape(M, N * Dv).astype(bf16)          # [m, n*Dv + d]
    if has_mask:
        mf = mask.reshape(M, N).astype(jnp.int8)

    if m_pad != M:
        pad = m_pad - M
        qf = jnp.pad(qf, ((0, pad), (0, 0)))
        kf = jnp.pad(kf, ((0, pad), (0, 0)))
        vf = jnp.pad(vf, ((0, pad), (0, 0)))
        if has_mask:
            mf = jnp.pad(mf, ((0, pad), (0, 0)))

    # ---- specs -------------------------------------------------------------
    in_specs = [
        pl.BlockSpec((bm, Dq), lambda i: (i, 0)),
        pl.BlockSpec((bm, N * Dk), lambda i: (i, 0)),
        pl.BlockSpec((bm, N * Dv), lambda i: (i, 0)),
    ]
    operands = [qf, kf, vf]
    if has_mask:
        in_specs.append(pl.BlockSpec((bm, N), lambda i: (i, 0)))
        operands.append(mf)
    in_specs += [
        pl.BlockSpec((Dq, N * Dk), lambda i: (0, 0)),
        pl.BlockSpec((N * Dv, N * O), lambda i: (0, 0)),
        pl.BlockSpec((1, N * O), lambda i: (0, 0)),
        pl.BlockSpec((N * Dk, N), lambda i: (0, 0)),
        pl.BlockSpec((N, N * O), lambda i: (0, 0)),
        pl.BlockSpec((N * O, O), lambda i: (0, 0)),
    ]
    operands += [a_tiled, wv_blk, bv_t, s_sel, e_sel, r_sel]

    # ---- VMEM budget (double-buffered streaming tiles + weights) -----------
    out_isz = jnp.dtype(q_in.dtype).itemsize
    step_bytes = bm * (
        (N * Dk + N * Dv) * 2            # k, v bf16 (lane-dense)
        + max(Dq, 128) * 2               # q bf16 (lane-padded)
        + max(O, 128) * out_isz          # out tile (lane-padded)
        + (128 if has_mask else 0)       # int8 mask (lane-padded)
    )
    weight_bytes = 2 * (a_tiled.size + wv_blk.size + s_sel.size + r_sel.size) \
        + 4 * (bv_t.size + e_sel.size)
    vmem_limit = int(min(48 * 2**20,
                         max(24 * 2**20, 4 * step_bytes + 2 * weight_bytes)))

    out = pl.pallas_call(
        _make_kernel(has_mask),
        out_shape=jax.ShapeDtypeStruct((m_pad, O), q_in.dtype),
        grid_spec=pltpu.PrefetchScalarGridSpec(
            num_scalar_prefetch=0,
            grid=(grid_m,),
            in_specs=in_specs,
            out_specs=pl.BlockSpec((bm, O), lambda i: (i, 0)),
        ),
        compiler_params=pltpu.CompilerParams(
            dimension_semantics=("parallel",),
            vmem_limit_bytes=vmem_limit,
        ),
    )(*operands)
    return out[:M].reshape(B, L, O)


def _reference(q_in, k_in, v_in, mask, wq, wk, wv, bv):
    O = wq.shape[-1]
    scale = 1.0 / (O ** 0.5)
    q = q_in @ wq
    k = k_in @ wk
    v = jnp.tanh(v_in @ wv + bv)
    attn = jnp.einsum('blnd,bld->bln', k, q) * scale
    if mask is not None:
        attn = jnp.where(mask, -1.0e9, attn)
    attn = jax.nn.softmax(attn, axis=-1)
    return jnp.einsum('bln,blnd->bld', attn, v)


if __name__ == "__main__":
    B, L, N = 2, 24, 8          # M = 48 rows -> 2 grid steps + padded tail
    Dq, Dk, Dv, O = 32, 32, 32, 32

    key = jax.random.PRNGKey(0)
    k0, k1, k2, k3, k4, k5, k6, k7 = jax.random.split(key, 8)

    q_in = jax.random.normal(k0, (B, L, Dq), dtype=jnp.float32)
    k_in = jax.random.normal(k1, (B, L, N, Dk), dtype=jnp.float32)
    v_in = jax.random.normal(k2, (B, L, N, Dv), dtype=jnp.float32)
    mask = jax.random.bernoulli(k3, 0.3, (B, L, N))

    # Linear weights stored already transposed: (Din, O)
    wq = jax.random.normal(k4, (Dq, O), dtype=jnp.float32) * (1.0 / Dq ** 0.5)
    wk = jax.random.normal(k5, (Dk, O), dtype=jnp.float32) * (1.0 / Dk ** 0.5)
    wv = jax.random.normal(k6, (Dv, O), dtype=jnp.float32) * (1.0 / Dv ** 0.5)
    bv = jax.random.normal(k7, (O,), dtype=jnp.float32) * 0.1

    # Masked path.
    out = scaled_soft_dot_attention(q_in, k_in, v_in, mask, wq, wk, wv, bv)
    out = jax.block_until_ready(out)
    ref = _reference(q_in, k_in, v_in, mask, wq, wk, wv, bv)
    assert out.shape == (B, L, O)
    # Tolerance covers bf16 streaming of q/k/v/weights (f32 accumulation) and
    # the EUP approximate reciprocal in the softmax normalization.
    assert jnp.allclose(out, ref, atol=5e-2, rtol=5e-2), "mismatch vs reference (mask)"

    # Specialized mask=None path (no mask input, no select in the kernel).
    out_nm = scaled_soft_dot_attention(q_in, k_in, v_in, None, wq, wk, wv, bv)
    out_nm = jax.block_until_ready(out_nm)
    ref_nm = _reference(q_in, k_in, v_in, None, wq, wk, wv, bv)
    assert jnp.allclose(out_nm, ref_nm, atol=5e-2, rtol=5e-2), "mismatch vs reference (no mask)"

    print("KERNEL_OK")
</pallas_src>

<mosaic_0001>
module attributes {stable_mosaic.version = 11 : i64} {
  func.func @kernel(%arg0: i32, %arg1: memref<32x32xbf16, #tpu.memory_space<vmem>>, %arg2: memref<32x256xbf16, #tpu.memory_space<vmem>>, %arg3: memref<32x256xbf16, #tpu.memory_space<vmem>>, %arg4: memref<32x8xi8, #tpu.memory_space<vmem>>, %arg5: memref<32x256xbf16, #tpu.memory_space<vmem>>, %arg6: memref<256x256xbf16, #tpu.memory_space<vmem>>, %arg7: memref<1x256xf32, #tpu.memory_space<vmem>>, %arg8: memref<256x8xbf16, #tpu.memory_space<vmem>>, %arg9: memref<8x256xf32, #tpu.memory_space<vmem>>, %arg10: memref<256x32xbf16, #tpu.memory_space<vmem>>, %arg11: memref<32x32xf32, #tpu.memory_space<vmem>>) attributes {dimension_semantics = [#tpu.dimension_semantics<parallel>], iteration_bounds = array<i64: 2>, scalar_prefetch = 0 : i64, scratch_operands = 0 : i64, tpu.core_type = #tpu.core_type<tc>, window_params = [{transform_indices = @transform_0, window_bounds = array<i64: 32, 32>}, {transform_indices = @transform_1, window_bounds = array<i64: 32, 256>}, {transform_indices = @transform_2, window_bounds = array<i64: 32, 256>}, {transform_indices = @transform_3, window_bounds = array<i64: 32, 8>}, {pipeline_mode = #tpu.pipeline_mode<synchronous>, transform_indices = @transform_4, window_bounds = array<i64: 32, 256>}, {pipeline_mode = #tpu.pipeline_mode<synchronous>, transform_indices = @transform_5, window_bounds = array<i64: 256, 256>}, {pipeline_mode = #tpu.pipeline_mode<synchronous>, transform_indices = @transform_6, window_bounds = array<i64: 1, 256>}, {pipeline_mode = #tpu.pipeline_mode<synchronous>, transform_indices = @transform_7, window_bounds = array<i64: 256, 8>}, {pipeline_mode = #tpu.pipeline_mode<synchronous>, transform_indices = @transform_8, window_bounds = array<i64: 8, 256>}, {pipeline_mode = #tpu.pipeline_mode<synchronous>, transform_indices = @transform_9, window_bounds = array<i64: 256, 32>}, {transform_indices = @transform_10, window_bounds = array<i64: 32, 32>}]} {
    %c0 = arith.constant 0 : index
    %c0_0 = arith.constant 0 : index
    %0 = vector.load %arg1[%c0, %c0_0] : memref<32x32xbf16, #tpu.memory_space<vmem>>, vector<32x32xbf16>
    %c0_1 = arith.constant 0 : index
    %c0_2 = arith.constant 0 : index
    %1 = vector.load %arg5[%c0_1, %c0_2] : memref<32x256xbf16, #tpu.memory_space<vmem>>, vector<32x256xbf16>
    %cst = arith.constant dense<0.000000e+00> : vector<32x256xf32>
    %2 = tpu.matmul %0, %1, %cst {dimension_numbers = #tpu.dot_dimension_numbers<[1], [0], [0], [1], [0, 0, 1, 1], [], []>} : vector<32x32xbf16>, vector<32x256xbf16>, vector<32x256xf32> -> vector<32x256xf32>
    %c0_3 = arith.constant 0 : index
    %c0_4 = arith.constant 0 : index
    %3 = vector.load %arg2[%c0_3, %c0_4] : memref<32x256xbf16, #tpu.memory_space<vmem>>, vector<32x256xbf16>
    %4 = arith.extf %3 : vector<32x256xbf16> to vector<32x256xf32>
    %5 = arith.mulf %4, %2 : vector<32x256xf32>
    %6 = arith.truncf %5 : vector<32x256xf32> to vector<32x256xbf16>
    %c0_5 = arith.constant 0 : index
    %c0_6 = arith.constant 0 : index
    %7 = vector.load %arg8[%c0_5, %c0_6] : memref<256x8xbf16, #tpu.memory_space<vmem>>, vector<256x8xbf16>
    %cst_7 = arith.constant dense<0.000000e+00> : vector<32x8xf32>
    %8 = tpu.matmul %6, %7, %cst_7 {dimension_numbers = #tpu.dot_dimension_numbers<[1], [0], [0], [1], [0, 0, 1, 1], [], []>} : vector<32x256xbf16>, vector<256x8xbf16>, vector<32x8xf32> -> vector<32x8xf32>
    %c0_8 = arith.constant 0 : index
    %c0_9 = arith.constant 0 : index
    %9 = vector.load %arg4[%c0_8, %c0_9] : memref<32x8xi8, #tpu.memory_space<vmem>>, vector<32x8xi8>
    %c0_i8 = arith.constant 0 : i8
    %10 = vector.broadcast %c0_i8 : i8 to vector<32x8xi8>
    %11 = arith.cmpi ne, %9, %10 : vector<32x8xi8>
    %cst_10 = arith.constant -1.000000e+09 : f32
    %12 = vector.broadcast %cst_10 : f32 to vector<32x8xf32>
    %13 = arith.select %11, %12, %8 : vector<32x8xi1>, vector<32x8xf32>
    %cst_11 = arith.constant dense<0xFF800000> : vector<32xf32>
    %14 = vector.multi_reduction <maximumf>, %13, %cst_11 [1] : vector<32x8xf32> to vector<32xf32>
    %15 = vector.shape_cast %14 : vector<32xf32> to vector<32x1xf32>
    %16 = vector.broadcast %15 : vector<32x1xf32> to vector<32x8xf32>
    %17 = arith.subf %13, %16 : vector<32x8xf32>
    %18 = math.exp %17 : vector<32x8xf32>
    %cst_12 = arith.constant dense<0.000000e+00> : vector<32xf32>
    %19 = vector.multi_reduction <add>, %18, %cst_12 [1] : vector<32x8xf32> to vector<32xf32>
    %20 = vector.shape_cast %19 : vector<32xf32> to vector<32x1xf32>
    %21 = tpu.reciprocal %20 {approx = true} : vector<32x1xf32> -> vector<32x1xf32>
    %22 = vector.broadcast %21 : vector<32x1xf32> to vector<32x8xf32>
    %23 = arith.mulf %18, %22 : vector<32x8xf32>
    %c0_13 = arith.constant 0 : index
    %c0_14 = arith.constant 0 : index
    %24 = vector.load %arg3[%c0_13, %c0_14] : memref<32x256xbf16, #tpu.memory_space<vmem>>, vector<32x256xbf16>
    %c0_15 = arith.constant 0 : index
    %c0_16 = arith.constant 0 : index
    %25 = vector.load %arg6[%c0_15, %c0_16] : memref<256x256xbf16, #tpu.memory_space<vmem>>, vector<256x256xbf16>
    %cst_17 = arith.constant dense<0.000000e+00> : vector<32x256xf32>
    %26 = tpu.matmul %24, %25, %cst_17 {dimension_numbers = #tpu.dot_dimension_numbers<[1], [0], [0], [1], [0, 0, 1, 1], [], []>} : vector<32x256xbf16>, vector<256x256xbf16>, vector<32x256xf32> -> vector<32x256xf32>
    %c0_18 = arith.constant 0 : index
    %c0_19 = arith.constant 0 : index
    %27 = vector.load %arg7[%c0_18, %c0_19] : memref<1x256xf32, #tpu.memory_space<vmem>>, vector<1x256xf32>
    %28 = vector.broadcast %27 : vector<1x256xf32> to vector<32x256xf32>
    %29 = arith.addf %26, %28 : vector<32x256xf32>
    %30 = math.tanh %29 : vector<32x256xf32>
    %c0_20 = arith.constant 0 : index
    %c0_21 = arith.constant 0 : index
    %31 = vector.load %arg9[%c0_20, %c0_21] : memref<8x256xf32, #tpu.memory_space<vmem>>, vector<8x256xf32>
    %cst_22 = arith.constant dense<0.000000e+00> : vector<32x256xf32>
    %32 = tpu.matmul %23, %31, %cst_22 {dimension_numbers = #tpu.dot_dimension_numbers<[1], [0], [0], [1], [0, 0, 1, 1], [], []>} : vector<32x8xf32>, vector<8x256xf32>, vector<32x256xf32> -> vector<32x256xf32>
    %33 = arith.mulf %32, %30 : vector<32x256xf32>
    %34 = arith.truncf %33 : vector<32x256xf32> to vector<32x256xbf16>
    %c0_23 = arith.constant 0 : index
    %c0_24 = arith.constant 0 : index
    %35 = vector.load %arg10[%c0_23, %c0_24] : memref<256x32xbf16, #tpu.memory_space<vmem>>, vector<256x32xbf16>
    %cst_25 = arith.constant dense<0.000000e+00> : vector<32x32xf32>
    %36 = tpu.matmul %34, %35, %cst_25 {dimension_numbers = #tpu.dot_dimension_numbers<[1], [0], [0], [1], [0, 0, 1, 1], [], []>} : vector<32x256xbf16>, vector<256x32xbf16>, vector<32x32xf32> -> vector<32x32xf32>
    %c0_26 = arith.constant 0 : index
    %c0_27 = arith.constant 0 : index
    %37 = vector.load %arg11[%c0_26, %c0_27] : memref<32x32xf32, #tpu.memory_space<vmem>>, vector<32x32xf32>
    tpu.vector_store %arg11[%c0_26, %c0_27], %36 {strides = array<i32>} : memref<32x32xf32, #tpu.memory_space<vmem>>, vector<32x32xf32>,
    return
  }
  func.func @transform_0(%arg0: i32) -> (i32, i32) {
    %c0_i32 = arith.constant 0 : i32
    %c0_i32_0 = arith.constant 0 : i32
    return %arg0, %c0_i32 : i32, i32
  }
  func.func @transform_1(%arg0: i32) -> (i32, i32) {
    %c0_i32 = arith.constant 0 : i32
    %c0_i32_0 = arith.constant 0 : i32
    return %arg0, %c0_i32 : i32, i32
  }
  func.func @transform_2(%arg0: i32) -> (i32, i32) {
    %c0_i32 = arith.constant 0 : i32
    %c0_i32_0 = arith.constant 0 : i32
    return %arg0, %c0_i32 : i32, i32
  }
  func.func @transform_3(%arg0: i32) -> (i32, i32) {
    %c0_i32 = arith.constant 0 : i32
    %c0_i32_0 = arith.constant 0 : i32
    return %arg0, %c0_i32 : i32, i32
  }
  func.func @transform_4(%arg0: i32) -> (i32, i32) {
    %c0_i32 = arith.constant 0 : i32
    %c0_i32_0 = arith.constant 0 : i32
    %c0_i32_1 = arith.constant 0 : i32
    return %c0_i32, %c0_i32_0 : i32, i32
  }
  func.func @transform_5(%arg0: i32) -> (i32, i32) {
    %c0_i32 = arith.constant 0 : i32
    %c0_i32_0 = arith.constant 0 : i32
    %c0_i32_1 = arith.constant 0 : i32
    return %c0_i32, %c0_i32_0 : i32, i32
  }
  func.func @transform_6(%arg0: i32) -> (i32, i32) {
    %c0_i32 = arith.constant 0 : i32
    %c0_i32_0 = arith.constant 0 : i32
    %c0_i32_1 = arith.constant 0 : i32
    return %c0_i32, %c0_i32_0 : i32, i32
  }
  func.func @transform_7(%arg0: i32) -> (i32, i32) {
    %c0_i32 = arith.constant 0 : i32
    %c0_i32_0 = arith.constant 0 : i32
    %c0_i32_1 = arith.constant 0 : i32
    return %c0_i32, %c0_i32_0 : i32, i32
  }
  func.func @transform_8(%arg0: i32) -> (i32, i32) {
    %c0_i32 = arith.constant 0 : i32
    %c0_i32_0 = arith.constant 0 : i32
    %c0_i32_1 = arith.constant 0 : i32
    return %c0_i32, %c0_i32_0 : i32, i32
  }
  func.func @transform_9(%arg0: i32) -> (i32, i32) {
    %c0_i32 = arith.constant 0 : i32
    %c0_i32_0 = arith.constant 0 : i32
    %c0_i32_1 = arith.constant 0 : i32
    return %c0_i32, %c0_i32_0 : i32, i32
  }
  func.func @transform_10(%arg0: i32) -> (i32, i32) {
    %c0_i32 = arith.constant 0 : i32
    %c0_i32_0 = arith.constant 0 : i32
    return %arg0, %c0_i32 : i32, i32
  }
}

</mosaic_0001>

<llo_original>
// kernel: tpu_custom_call.1
$region0: #{tpu_custom_call.1}
  #allocation0 [shape = 'u32[]', space=smem, size = 0x4, offset = 0x4, fixed_abs, tag = 'smem constant byte address 0x4 - core index']
  #allocation1 [shape = 'u32[144,128]{1,0:T(1,128)}', space=vmem, size = 0x12000, scoped, tag = 'internal scratch']
  %s0 = inlined_call_operand.vmem [shape: bf16[64,32], index: 0, kind: input, shape index: {}]
  %s1 = inlined_call_operand.vmem [shape: bf16[64,256], index: 1, kind: input, shape index: {}]
  %s2 = inlined_call_operand.hbm [shape: bf16[64,256], index: 2, kind: input, shape index: {}]
  %s3 = inlined_call_operand.vmem [shape: s8[64,8], index: 3, kind: input, shape index: {}]
  %s4 = inlined_call_operand.hbm [shape: bf16[32,256], index: 4, kind: input, shape index: {}]
  %s5 = inlined_call_operand.vmem [shape: bf16[256,256], index: 5, kind: input, shape index: {}]
  %s6 = inlined_call_operand.vmem [shape: f32[1,256], index: 6, kind: input, shape index: {}]
  %s7 = inlined_call_operand.vmem [shape: bf16[256,8], index: 7, kind: input, shape index: {}]
  %s8 = inlined_call_operand.vmem [shape: f32[8,256], index: 8, kind: input, shape index: {}]
  %s9 = inlined_call_operand.vmem [shape: bf16[256,32], index: 9, kind: input, shape index: {}]
  %s10 = inlined_call_operand.vmem [shape: f32[64,32], index: 10, kind: output, shape index: {}]
  %s11 = sld [smem:[#allocation0]]
  $region81: #{tpu_custom_call.1} parent=0
    _
  %s13 = ssub.s32 1, %s11
  %s14 = scalar_select 0, %s13, %s11
  $region1: #{tpu_custom_call.1} parent=0
    #allocation2 [shape = 'u8[32768]{0}', space=vmem, size = 0x8000, scoped, tag = 'input window, operand 2']
    #allocation3 [shape = 's32[2]{0}', space=sflag, size = 0x8, scoped, tag = 'scoped memory for tpu_custom_call.1']
    #allocation4 [shape = 'u8[16384]{0}', space=vmem, size = 0x4000, scoped, tag = 'input window, operand 4, single buffered']
    #allocation5 [shape = 's32[1]{0}', space=sflag, size = 0x4, scoped, tag = 'scoped memory for tpu_custom_call.1']
    %15 = vsyncpa [#allocation3], 0
    %s16 = scalar_lea.sflag [#allocation3], 1
    %17 = vsyncpa %s16, 0
    %18 = vsyncpa [#allocation5], 0
    loop: start=0, step=1, limit=4
    $region2: #{tpu_custom_call.1} parent=1 // loop_pre_header
      _
    $region3: #{tpu_custom_call.1} parent=1 // loop_header
      %s20 = sphi 0, %s24
      %p21 = scmp.ge.s32.totalorder %s20, 4
      %s30 = sphi 0, %s32
      %s33 = sphi 0, %s30
      %s34 = sphi 0, %s33
      %s50 = sphi 0, %s34
      %s56 = sphi 0, %s58
      %s59 = sphi 0, %s56
      %s60 = sphi 0, %s59
      %s76 = sphi 0, %s60
      %s82 = sphi 0, %s84
      %s85 = sphi 0, %s82
      %s86 = sphi 0, %s85
      %s102 = sphi 0, %s86
      %s108 = sphi 0, %s110
      %s111 = sphi 0, %s108
      %s112 = sphi 0, %s111
      %s128 = sphi 0, %s112
      %s132 = sphi 0, %s132
      %s134 = sphi 0, %s132
      %s135 = sphi 0, %s134
      %s149 = sphi 0, %s135
      %s153 = sphi 0, %s153
      %s155 = sphi 0, %s153
      %s156 = sphi 0, %s155
      %s170 = sphi 0, %s156
      %s174 = sphi 0, %s174
      %s176 = sphi 0, %s174
      %s177 = sphi 0, %s176
      %s191 = sphi 0, %s177
      %s195 = sphi 0, %s195
      %s197 = sphi 0, %s195
      %s198 = sphi 0, %s197
      %s212 = sphi 0, %s198
      %s216 = sphi 0, %s216
      %s218 = sphi 0, %s216
      %s219 = sphi 0, %s218
      %s233 = sphi 0, %s219
      %s237 = sphi 0, %s237
      %s239 = sphi 0, %s237
      %s240 = sphi 0, %s239
      %s254 = sphi 0, %s240
      %s260 = sphi 0, %s262
      %s263 = sphi 0, %s260
      %s264 = sphi 0, %s263
      %s280 = sphi 0, %s264
    $region4: #{tpu_custom_call.1} parent=1 // loop_header_branch
      %23 = sbr.rel (%p21) target = $region8
    $region5: #{tpu_custom_call.1} parent=1 // loop_body
      %s25 = ssub.s32 %s20, 1
      %s26 = ssub.s32 %s20, 2
      %s27 = sadd.s32 %s20, 1
      %s28 = ssub.s32 %s20, %s27
      %p29 = scmp.eq.s32.totalorder %s28, 0
      %s31 = sadd.s32 %s30, 1
      %s32 = scalar_select %p29, %s30, %s31
      %p35 = pneg %p29
      %p36 = scmp.eq.s32.totalorder %s20, 1
      %p37 = por %p35, %p36
      %p38 = scmp.ne.s32.totalorder %s30, %s33
      %p39 = scmp.eq.s32.totalorder %s20, 0
      %p40 = por %p38, %p39
      %p41 = scmp.ne.s32.totalorder %s30, %s33
      %p42 = scmp.eq.s32.totalorder %s25, 1
      %p43 = por %p41, %p42
      %p44 = scmp.ne.s32.totalorder %s33, %s34
      %p45 = scmp.eq.s32.totalorder %s25, 0
      %p46 = por %p44, %p45
      %p47 = scmp.ne.s32.totalorder %s33, %s34
      %p48 = scmp.eq.s32.totalorder %s26, 1
      %p49 = por %p47, %p48
      %p51 = scmp.ne.s32.totalorder %s34, %s50
      %p52 = scmp.eq.s32.totalorder %s26, 0
      %p53 = por %p51, %p52
      %s54 = ssub.s32 %s20, %s27
      %p55 = scmp.eq.s32.totalorder %s54, 0
      %s57 = sadd.s32 %s56, 1
      %s58 = scalar_select %p55, %s56, %s57
      %p61 = pneg %p55
      %p62 = scmp.eq.s32.totalorder %s20, 1
      %p63 = por %p61, %p62
      %p64 = scmp.ne.s32.totalorder %s56, %s59
      %p65 = scmp.eq.s32.totalorder %s20, 0
      %p66 = por %p64, %p65
      %p67 = scmp.ne.s32.totalorder %s56, %s59
      %p68 = scmp.eq.s32.totalorder %s25, 1
      %p69 = por %p67, %p68
      %p70 = scmp.ne.s32.totalorder %s59, %s60
      %p71 = scmp.eq.s32.totalorder %s25, 0
      %p72 = por %p70, %p71
      %p73 = scmp.ne.s32.totalorder %s59, %s60
      %p74 = scmp.eq.s32.totalorder %s26, 1
      %p75 = por %p73, %p74
      %p77 = scmp.ne.s32.totalorder %s60, %s76
      %p78 = scmp.eq.s32.totalorder %s26, 0
      %p79 = por %p77, %p78
      %s80 = ssub.s32 %s20, %s27
      %p81 = scmp.eq.s32.totalorder %s80, 0
      %s83 = sadd.s32 %s82, 1
      %s84 = scalar_select %p81, %s82, %s83
      %p87 = pneg %p81
      %p88 = scmp.eq.s32.totalorder %s20, 1
      %p89 = por %p87, %p88
      %p90 = scmp.ne.s32.totalorder %s82, %s85
      %p91 = scmp.eq.s32.totalorder %s20, 0
      %p92 = por %p90, %p91
      %p93 = scmp.ne.s32.totalorder %s82, %s85
      %p94 = scmp.eq.s32.totalorder %s25, 1
      %p95 = por %p93, %p94
      %p96 = scmp.ne.s32.totalorder %s85, %s86
      %p97 = scmp.eq.s32.totalorder %s25, 0
      %p98 = por %p96, %p97
      %p99 = scmp.ne.s32.totalorder %s85, %s86
      %p100 = scmp.eq.s32.totalorder %s26, 1
      %p101 = por %p99, %p100
      %p103 = scmp.ne.s32.totalorder %s86, %s102
      %p104 = scmp.eq.s32.totalorder %s26, 0
      %p105 = por %p103, %p104
      %s106 = ssub.s32 %s20, %s27
      %p107 = scmp.eq.s32.totalorder %s106, 0
      %s109 = sadd.s32 %s108, 1
      %s110 = scalar_select %p107, %s108, %s109
      %p113 = pneg %p107
      %p114 = scmp.eq.s32.totalorder %s20, 1
      %p115 = por %p113, %p114
      %p116 = scmp.ne.s32.totalorder %s108, %s111
      %p117 = scmp.eq.s32.totalorder %s20, 0
      %p118 = por %p116, %p117
      %p119 = scmp.ne.s32.totalorder %s108, %s111
      %p120 = scmp.eq.s32.totalorder %s25, 1
      %p121 = por %p119, %p120
      %p122 = scmp.ne.s32.totalorder %s111, %s112
      %p123 = scmp.eq.s32.totalorder %s25, 0
      %p124 = por %p122, %p123
      %p125 = scmp.ne.s32.totalorder %s111, %s112
      %p126 = scmp.eq.s32.totalorder %s26, 1
      %p127 = por %p125, %p126
      %p129 = scmp.ne.s32.totalorder %s112, %s128
      %p130 = scmp.eq.s32.totalorder %s26, 0
      %p131 = por %p129, %p130
      %s133 = sadd.s32 %s132, 1
      %p136 = scmp.eq.s32.totalorder %s20, 1
      %p137 = scmp.ne.s32.totalorder %s132, %s134
      %p138 = scmp.eq.s32.totalorder %s20, 0
      %p139 = por %p137, %p138
      %p140 = scmp.ne.s32.totalorder %s132, %s134
      %p141 = scmp.eq.s32.totalorder %s25, 1
      %p142 = por %p140, %p141
      %p143 = scmp.ne.s32.totalorder %s134, %s135
      %p144 = scmp.eq.s32.totalorder %s25, 0
      %p145 = por %p143, %p144
      %p146 = scmp.ne.s32.totalorder %s134, %s135
      %p147 = scmp.eq.s32.totalorder %s26, 1
      %p148 = por %p146, %p147
      %p150 = scmp.ne.s32.totalorder %s135, %s149
      %p151 = scmp.eq.s32.totalorder %s26, 0
      %p152 = por %p150, %p151
      %s154 = sadd.s32 %s153, 1
      %p157 = scmp.eq.s32.totalorder %s20, 1
      %p158 = scmp.ne.s32.totalorder %s153, %s155
      %p159 = scmp.eq.s32.totalorder %s20, 0
      %p160 = por %p158, %p159
      %p161 = scmp.ne.s32.totalorder %s153, %s155
      %p162 = scmp.eq.s32.totalorder %s25, 1
      %p163 = por %p161, %p162
      %p164 = scmp.ne.s32.totalorder %s155, %s156
      %p165 = scmp.eq.s32.totalorder %s25, 0
      %p166 = por %p164, %p165
      %p167 = scmp.ne.s32.totalorder %s155, %s156
      %p168 = scmp.eq.s32.totalorder %s26, 1
      %p169 = por %p167, %p168
      %p171 = scmp.ne.s32.totalorder %s156, %s170
      %p172 = scmp.eq.s32.totalorder %s26, 0
      %p173 = por %p171, %p172
      %s175 = sadd.s32 %s174, 1
      %p178 = scmp.eq.s32.totalorder %s20, 1
      %p179 = scmp.ne.s32.totalorder %s174, %s176
      %p180 = scmp.eq.s32.totalorder %s20, 0
      %p181 = por %p179, %p180
      %p182 = scmp.ne.s32.totalorder %s174, %s176
      %p183 = scmp.eq.s32.totalorder %s25, 1
      %p184 = por %p182, %p183
      %p185 = scmp.ne.s32.totalorder %s176, %s177
      %p186 = scmp.eq.s32.totalorder %s25, 0
      %p187 = por %p185, %p186
      %p188 = scmp.ne.s32.totalorder %s176, %s177
      %p189 = scmp.eq.s32.totalorder %s26, 1
      %p190 = por %p188, %p189
      %p192 = scmp.ne.s32.totalorder %s177, %s191
      %p193 = scmp.eq.s32.totalorder %s26, 0
      %p194 = por %p192, %p193
      %s196 = sadd.s32 %s195, 1
      %p199 = scmp.eq.s32.totalorder %s20, 1
      %p200 = scmp.ne.s32.totalorder %s195, %s197
      %p201 = scmp.eq.s32.totalorder %s20, 0
      %p202 = por %p200, %p201
      %p203 = scmp.ne.s32.totalorder %s195, %s197
      %p204 = scmp.eq.s32.totalorder %s25, 1
      %p205 = por %p203, %p204
      %p206 = scmp.ne.s32.totalorder %s197, %s198
      %p207 = scmp.eq.s32.totalorder %s25, 0
      %p208 = por %p206, %p207
      %p209 = scmp.ne.s32.totalorder %s197, %s198
      %p210 = scmp.eq.s32.totalorder %s26, 1
      %p211 = por %p209, %p210
      %p213 = scmp.ne.s32.totalorder %s198, %s212
      %p214 = scmp.eq.s32.totalorder %s26, 0
      %p215 = por %p213, %p214
      %s217 = sadd.s32 %s216, 1
      %p220 = scmp.eq.s32.totalorder %s20, 1
      %p221 = scmp.ne.s32.totalorder %s216, %s218
      %p222 = scmp.eq.s32.totalorder %s20, 0
      %p223 = por %p221, %p222
      %p224 = scmp.ne.s32.totalorder %s216, %s218
      %p225 = scmp.eq.s32.totalorder %s25, 1
      %p226 = por %p224, %p225
      %p227 = scmp.ne.s32.totalorder %s218, %s219
      %p228 = scmp.eq.s32.totalorder %s25, 0
      %p229 = por %p227, %p228
      %p230 = scmp.ne.s32.totalorder %s218, %s219
      %p231 = scmp.eq.s32.totalorder %s26, 1
      %p232 = por %p230, %p231
      %p234 = scmp.ne.s32.totalorder %s219, %s233
      %p235 = scmp.eq.s32.totalorder %s26, 0
      %p236 = por %p234, %p235
      %s238 = sadd.s32 %s237, 1
      %p241 = scmp.eq.s32.totalorder %s20, 1
      %p242 = scmp.ne.s32.totalorder %s237, %s239
      %p243 = scmp.eq.s32.totalorder %s20, 0
      %p244 = por %p242, %p243
      %p245 = scmp.ne.s32.totalorder %s237, %s239
      %p246 = scmp.eq.s32.totalorder %s25, 1
      %p247 = por %p245, %p246
      %p248 = scmp.ne.s32.totalorder %s239, %s240
      %p249 = scmp.eq.s32.totalorder %s25, 0
      %p250 = por %p248, %p249
      %p251 = scmp.ne.s32.totalorder %s239, %s240
      %p252 = scmp.eq.s32.totalorder %s26, 1
      %p253 = por %p251, %p252
      %p255 = scmp.ne.s32.totalorder %s240, %s254
      %p256 = scmp.eq.s32.totalorder %s26, 0
      %p257 = por %p255, %p256
      %s258 = ssub.s32 %s20, %s27
      %p259 = scmp.eq.s32.totalorder %s258, 0
      %s261 = sadd.s32 %s260, 1
      %s262 = scalar_select %p259, %s260, %s261
      %p265 = pneg %p259
      %p266 = scmp.eq.s32.totalorder %s20, 1
      %p267 = por %p265, %p266
      %p268 = scmp.ne.s32.totalorder %s260, %s263
      %p269 = scmp.eq.s32.totalorder %s20, 0
      %p270 = por %p268, %p269
      %p271 = scmp.ne.s32.totalorder %s260, %s263
      %p272 = scmp.eq.s32.totalorder %s25, 1
      %p273 = por %p271, %p272
      %p274 = scmp.ne.s32.totalorder %s263, %s264
      %p275 = scmp.eq.s32.totalorder %s25, 0
      %p276 = por %p274, %p275
      %p277 = scmp.ne.s32.totalorder %s263, %s264
      %p278 = scmp.eq.s32.totalorder %s26, 1
      %p279 = por %p277, %p278
      %p281 = scmp.ne.s32.totalorder %s264, %s280
      %p282 = scmp.eq.s32.totalorder %s26, 0
      %p283 = por %p281, %p282
      %p284 = scmp.le.s32.totalorder 1, %s20
      %p285 = scmp.lt.s32.totalorder %s20, 3
      %p286 = pnand %p284, %p285
      %p287 = pneg %p286
      // Predicated region
      $region9: #{tpu_custom_call.1} parent=5 // pred_check
        _
      $region10: #{tpu_custom_call.1} parent=5 // pred_check_branch
        %289 = sbr.rel (%p286) target = $region12
      $region11: #{tpu_custom_call.1} parent=5 // pred_region
        %s290 = ssub.s32 %s20, 1
        // Predicated region
        $region13: #{tpu_custom_call.1} parent=11 // pred_check
          %p291 = pneg %p145
        $region14: #{tpu_custom_call.1} parent=11 // pred_check_branch
          %293 = sbr.rel (%p291) target = $region16
        $region15: #{tpu_custom_call.1} parent=11 // pred_region
          %s295 = ssub.s32 512, 512
          %296 = vsyncadd [#allocation5], %s295
          %s297 = sshll.u32 [#allocation4], 4
          %s298 = int_to_ptr.vmem [resolvable:$true] %s297
          %303 = dma.hbm_to_vmem [thread:$0]  %s4, 512, %s298, [#allocation5], 128, 128, 8
        $region16: #{tpu_custom_call.1} parent=11 // pred_fallthru
          _
        // Predicated region
        $region17: #{tpu_custom_call.1} parent=11 // pred_check
          %p304 = pneg %p166
        $region18: #{tpu_custom_call.1} parent=11 // pred_check_branch
          %306 = sbr.rel (%p304) target = $region20
        $region19: #{tpu_custom_call.1} parent=11 // pred_region
          _
        $region20: #{tpu_custom_call.1} parent=11 // pred_fallthru
          _
        // Predicated region
        $region21: #{tpu_custom_call.1} parent=11 // pred_check
          %p307 = pneg %p187
        $region22: #{tpu_custom_call.1} parent=11 // pred_check_branch
          %309 = sbr.rel (%p307) target = $region24
        $region23: #{tpu_custom_call.1} parent=11 // pred_region
          _
        $region24: #{tpu_custom_call.1} parent=11 // pred_fallthru
          _
        // Predicated region
        $region25: #{tpu_custom_call.1} parent=11 // pred_check
          %p310 = pneg %p208
        $region26: #{tpu_custom_call.1} parent=11 // pred_check_branch
          %312 = sbr.rel (%p310) target = $region28
        $region27: #{tpu_custom_call.1} parent=11 // pred_region
          _
        $region28: #{tpu_custom_call.1} parent=11 // pred_fallthru
          _
        // Predicated region
        $region29: #{tpu_custom_call.1} parent=11 // pred_check
          %p313 = pneg %p229
        $region30: #{tpu_custom_call.1} parent=11 // pred_check_branch
          %315 = sbr.rel (%p313) target = $region32
        $region31: #{tpu_custom_call.1} parent=11 // pred_region
          _
        $region32: #{tpu_custom_call.1} parent=11 // pred_fallthru
          _
        // Predicated region
        $region33: #{tpu_custom_call.1} parent=11 // pred_check
          %p316 = pneg %p250
        $region34: #{tpu_custom_call.1} parent=11 // pred_check_branch
          %318 = sbr.rel (%p316) target = $region36
        $region35: #{tpu_custom_call.1} parent=11 // pred_region
          _
        $region36: #{tpu_custom_call.1} parent=11 // pred_fallthru
          _
      $region12: #{tpu_custom_call.1} parent=5 // pred_fallthru
        _
      %p319 = scmp.lt.s32.totalorder %s20, 2
      // Predicated region
      $region37: #{tpu_custom_call.1} parent=5 // pred_check
        %p320 = pneg %p319
      $region38: #{tpu_custom_call.1} parent=5 // pred_check_branch
        %322 = sbr.rel (%p320) target = $region40
      $region39: #{tpu_custom_call.1} parent=5 // pred_region
        // Predicated region
        $region41: #{tpu_custom_call.1} parent=39 // pred_check
          %p323 = pneg %p40
        $region42: #{tpu_custom_call.1} parent=39 // pred_check_branch
          %325 = sbr.rel (%p323) target = $region44
        $region43: #{tpu_custom_call.1} parent=39 // pred_region
          %s326 = smul.u32 4, %s20
          %p327 = scmp.lt.s32.totalorder %s326, 7
          %s328 = scalar_select %p327, %s326, 7
          %s329 = smul.addr %s328, 4
          %s330 = scalar_lea.vmem %s0, %s329
          %s331 = smul.u32 4, %s20
        $region44: #{tpu_custom_call.1} parent=39 // pred_fallthru
          _
        // Predicated region
        $region45: #{tpu_custom_call.1} parent=39 // pred_check
          %p332 = pneg %p66
        $region46: #{tpu_custom_call.1} parent=39 // pred_check_branch
          %334 = sbr.rel (%p332) target = $region48
        $region47: #{tpu_custom_call.1} parent=39 // pred_region
          %s335 = smul.u32 4, %s20
          %p336 = scmp.lt.s32.totalorder %s335, 7
          %s337 = scalar_select %p336, %s335, 7
          %s338 = smul.addr %s337, 2
          %s339 = smul.addr %s338, 4
          %s340 = scalar_lea.vmem %s1, %s339
          %s341 = smul.u32 4, %s20
        $region48: #{tpu_custom_call.1} parent=39 // pred_fallthru
          _
        // Predicated region
        $region49: #{tpu_custom_call.1} parent=39 // pred_check
          %p342 = pneg %p92
        $region50: #{tpu_custom_call.1} parent=39 // pred_check_branch
          %344 = sbr.rel (%p342) target = $region52
        $region51: #{tpu_custom_call.1} parent=39 // pred_region
          %s345 = sand.u32 %s82, 1
          %s346 = scalar_lea.sflag [#allocation3], %s345
          %s347 = sand.u32 %s82, 1
          %s348 = smul.addr %s347, 32
          %s349 = scalar_lea.vmem [#allocation2], %s348
          %s350 = smul.u32 4, %s20
          %s352 = ssub.s32 512, 512
          %353 = vsyncadd %s346, %s352
          %s354 = smul.addr %s350, 2
          %s355 = smul.addr %s354, 64
          %s356 = scalar_lea.hbm %s2, %s355
          %s357 = sshll.u32 %s349, 4
          %s358 = int_to_ptr.vmem [resolvable:$true] %s357
          %363 = dma.hbm_to_vmem [thread:$0]  %s356, 512, %s358, %s346, 128, 128, 8
        $region52: #{tpu_custom_call.1} parent=39 // pred_fallthru
          _
        // Predicated region
        $region53: #{tpu_custom_call.1} parent=39 // pred_check
          %p364 = pneg %p118
        $region54: #{tpu_custom_call.1} parent=39 // pred_check_branch
          %366 = sbr.rel (%p364) target = $region56
        $region55: #{tpu_custom_call.1} parent=39 // pred_region
          %s367 = smul.u32 4, %s20
          %p368 = scmp.lt.s32.totalorder %s367, 7
          %s369 = scalar_select %p368, %s367, 7
          %s370 = smul.addr %s369, 2
          %s371 = scalar_lea.vmem %s3, %s370
          %s372 = smul.u32 4, %s20
        $region56: #{tpu_custom_call.1} parent=39 // pred_fallthru
          _
      $region40: #{tpu_custom_call.1} parent=5 // pred_fallthru
        _
      %p373 = scmp.le.s32.totalorder 1, %s20
      %p374 = scmp.lt.s32.totalorder %s20, 3
      %p375 = pnand %p373, %p374
      %p376 = pneg %p375
      // Predicated region
      $region57: #{tpu_custom_call.1} parent=5 // pred_check
        _
      $region58: #{tpu_custom_call.1} parent=5 // pred_check_branch
        %378 = sbr.rel (%p375) target = $region60
      $region59: #{tpu_custom_call.1} parent=5 // pred_region
        %s379 = ssub.s32 %s20, 1
        %s380 = sand.u32 %s85, 1
        %s381 = scalar_lea.sflag [#allocation3], %s380
        %s382 = sand.u32 %s85, 1
        %s383 = smul.addr %s382, 32
        %s384 = scalar_lea.vmem [#allocation2], %s383
        // Predicated region
        $region61: #{tpu_custom_call.1} parent=59 // pred_check
          %p385 = pneg %p98
        $region62: #{tpu_custom_call.1} parent=59 // pred_check_branch
          %387 = sbr.rel (%p385) target = $region64
        $region63: #{tpu_custom_call.1} parent=59 // pred_region
          %388 = dma.done %s381, 512
        $region64: #{tpu_custom_call.1} parent=59 // pred_fallthru
          _
        // Predicated region
        $region65: #{tpu_custom_call.1} parent=59 // pred_check
          %p389 = pneg %p145
        $region66: #{tpu_custom_call.1} parent=59 // pred_check_branch
          %391 = sbr.rel (%p389) target = $region68
        $region67: #{tpu_custom_call.1} parent=59 // pred_region
          %392 = dma.done [#allocation5], 512
        $region68: #{tpu_custom_call.1} parent=59 // pred_fallthru
          _
        %s393 = smul.u32 4, %s25
        %p394 = scmp.lt.s32.totalorder %s393, 7
        %s395 = scalar_select %p394, %s393, 7
        %s396 = smul.addr %s395, 4
        %s397 = scalar_lea.vmem %s0, %s396
        %p398 = pneg %p46
        %p399 = pneg %p43
        %s400 = smul.u32 4, %s25
        %p401 = scmp.lt.s32.totalorder %s400, 7
        %s402 = scalar_select %p401, %s400, 7
        %s403 = smul.addr %s402, 2
        %s404 = smul.addr %s403, 4
        %s405 = scalar_lea.vmem %s1, %s404
        %p406 = pneg %p72
        %p407 = pneg %p69
        %s408 = sand.u32 %s85, 1
        %s409 = scalar_lea.sflag [#allocation3], %s408
        %s410 = sand.u32 %s85, 1
        %s411 = smul.addr %s410, 32
        %s412 = scalar_lea.vmem [#allocation2], %s411
        %p413 = pneg %p98
        %p414 = pneg %p95
        %s415 = smul.u32 4, %s25
        %p416 = scmp.lt.s32.totalorder %s415, 7
        %s417 = scalar_select %p416, %s415, 7
        %s418 = smul.addr %s417, 2
        %s419 = scalar_lea.vmem %s3, %s418
        %p420 = pneg %p124
        %p421 = pneg %p121
        %p422 = pneg %p145
        %p423 = pneg %p142
        %p424 = pneg %p166
        %p425 = pneg %p163
        %p426 = pneg %p187
        %p427 = pneg %p184
        %p428 = pneg %p208
        %p429 = pneg %p205
        %p430 = pneg %p229
        %p431 = pneg %p226
        %p432 = pneg %p250
        %p433 = pneg %p247
        %p434 = pneg %p276
        %p435 = pneg %p273
        %s436 = smul.u32 4, %s25
        %p437 = scmp.lt.s32.totalorder %s436, 7
        %s438 = scalar_select %p437, %s436, 7
        %s439 = smul.addr %s438, 8
        %s440 = scalar_lea.vmem %s10, %s439
        %s441 = smul.u32 4, %s25
        %p442 = scmp.lt.s32.totalorder %s441, 7
        %s443 = scalar_select %p442, %s441, 7
        %s444 = smul.addr %s443, 4
        %s445 = scalar_lea.vmem %s0, %s444
        %s446 = smul.u32 4, %s25
        %s447 = smul.u32 4, %s25
        %p448 = scmp.lt.s32.totalorder %s447, 7
        %s449 = scalar_select %p448, %s447, 7
        %s450 = smul.addr %s449, 2
        %s451 = smul.addr %s450, 4
        %s452 = scalar_lea.vmem %s1, %s451
        %s453 = smul.u32 4, %s25
        %s454 = smul.u32 4, %s25
        %s455 = smul.u32 4, %s25
        %p456 = scmp.lt.s32.totalorder %s455, 7
        %s457 = scalar_select %p456, %s455, 7
        %s458 = smul.addr %s457, 2
        %s459 = scalar_lea.vmem %s3, %s458
        %s460 = smul.u32 4, %s25
        %s461 = smul.u32 4, %s25
        %p462 = scmp.lt.s32.totalorder %s461, 7
        %s463 = scalar_select %p462, %s461, 7
        %s464 = smul.addr %s463, 8
        %s465 = scalar_lea.vmem %s10, %s464
        %s466 = smul.u32 4, %s25
        %v470 = vld [vmem:[%s445] sm:$0xf]
        %v471 = vld [vmem:[%s445 + $0x4] sm:$0xf]
        %v472 = vld [vmem:[%s445 + $0x8] sm:$0xf]
        %v473 = vld [vmem:[%s445 + $0xc] sm:$0xf]
        %v474 = vld [vmem:[#allocation4] sm:$0xff]
        %v475 = vld [vmem:[#allocation4 + $0x8] sm:$0xff]
        %v476 = vld [vmem:[#allocation4 + $0x10] sm:$0xff]
        %v477 = vld [vmem:[#allocation4 + $0x18] sm:$0xff]
        %v482 = vunpack.c.l.b16 %v470
        %v483 = vunpack.c.l.b16 %v471
        %v484 = vunpack.c.l.b16 %v472
        %v485 = vunpack.c.l.b16 %v473
        %v486 = vpack.c.b16 %v483, %v482
        %v487 = vpack.c.b16 %v485, %v484
        %v492 = vunpack.c.l.b16 %v474
        %v493 = vunpack.c.h.b16 %v474
        %v494 = vunpack.c.l.b16 %v475
        %v495 = vunpack.c.h.b16 %v475
        %v496 = vunpack.c.l.b16 %v476
        %v497 = vunpack.c.h.b16 %v476
        %v498 = vunpack.c.l.b16 %v477
        %v499 = vunpack.c.h.b16 %v477
        %v500 = vpack.c.b16 %v494, %v492
        %v501 = vpack.c.b16 %v495, %v493
        %v502 = vpack.c.b16 %v498, %v496
        %v503 = vpack.c.b16 %v499, %v497
        %vm508 = vcmask 261120
        %v510 = vsel %vm508, %v486, 0
        %v513 = vsel %vm508, %v487, 0
        %515 = vmatprep.subr.bf16.mxu0 0
        %516 = vmatpush1.bf16.msra.mxu0 0
        %517 = vmatprep.subr.bf16.mxu0 0
        %518 = vmatpush1.bf16.msra.mxu0 0
        %519 = vmatprep.subr.bf16.mxu0 0
        %520 = vmatpush1.bf16.msra.mxu0 0
        %521 = vmatprep.subr.bf16.mxu0 0
        %522 = vmatpush1.bf16.msra.mxu0 0
        %523 = vmatprep.subr.bf16.mxu0 0
        %524 = vmatpush1.bf16.msra.mxu0 0
        %525 = vmatprep.subr.bf16.mxu0 0
        %526 = vmatpush1.bf16.msra.mxu0 0
        %527 = vmatprep.subr.bf16.mxu0 %v503
        %528 = vmatpush1.bf16.msra.mxu0 %v502
        %529 = vmatprep.subr.bf16.mxu0 %v501
        %530 = vmatpush1.bf16.msra.mxu0 %v500
        %531 = vmatprep.subr.bf16.mxu0 0
        %532 = vmatpush2.bf16.msra.mxu0 0
        %533 = vmatprep.subr.bf16.mxu0 0
        %534 = vmatpush2.bf16.msra.mxu0 0
        %535 = vmatprep.subr.bf16.mxu0 0
        %536 = vmatpush2.bf16.msra.mxu0 0
        %537 = vmatprep.subr.bf16.mxu0 0
        %538 = vmatpush2.bf16.msra.mxu0 0
        %539 = vmatprep.subr.bf16.mxu0 0
        %540 = vmatpush2.bf16.msra.mxu0 0
        %541 = vmatprep.subr.bf16.mxu0 0
        %542 = vmatpush2.bf16.msra.mxu0 0
        %543 = vmatprep.subr.bf16.mxu0 0
        %544 = vmatpush2.bf16.msra.mxu0 0
        %545 = vmatprep.subr.bf16.mxu0 0
        %546 = vmatpush2.bf16.msra.mxu0 0
        %547 = vmatprep.mubr.bf16.mxu0 0
        %548 = vmatmul.mubr.bf16.gmra.mxu0 %v510
        %v549 = vpop.f32.mrf.mxu0
        %v550 = vadd.f32 0.0, %v549
        %v551 = vpop.f32.mrf.mxu0
        %v552 = vadd.f32 0.0, %v551
        %v553 = vpop.f32.mrf.mxu0
        %v554 = vadd.f32 0.0, %v553
        %v555 = vpop.f32.mrf.mxu0
        %v556 = vadd.f32 0.0, %v555
        %557 = vmatprep.mubr.bf16.mxu0 0
        %558 = vmatmul.mubr.bf16.gmra.mxu0 %v513
        %v559 = vpop.f32.mrf.mxu0
        %v560 = vadd.f32 0.0, %v559
        %v561 = vpop.f32.mrf.mxu0
        %v562 = vadd.f32 0.0, %v561
        %v563 = vpop.f32.mrf.mxu0
        %v564 = vadd.f32 0.0, %v563
        %v565 = vpop.f32.mrf.mxu0
        %v566 = vadd.f32 0.0, %v565
        %567 = vdwg.mxu0
        %v568 = vld [vmem:[%s452] sm:$0xff]
        %v569 = vld [vmem:[%s452 + $0x8] sm:$0xff]
        %v570 = vld [vmem:[%s452 + $0x10] sm:$0xff]
        %v571 = vld [vmem:[%s452 + $0x18] sm:$0xff]
        %v572 = vunpack.c.l.bf16 %v568
        %v573 = vunpack.c.h.bf16 %v568
        %v574 = vunpack.c.l.bf16 %v569
        %v575 = vunpack.c.h.bf16 %v569
        %v576 = vunpack.c.l.bf16 %v570
        %v577 = vunpack.c.h.bf16 %v570
        %v578 = vunpack.c.l.bf16 %v571
        %v579 = vunpack.c.h.bf16 %v571
        %v580 = vmul.f32 %v572, %v550
        %v581 = vmul.f32 %v573, %v552
        %v582 = vmul.f32 %v574, %v554
        %v583 = vmul.f32 %v575, %v556
        %v584 = vmul.f32 %v576, %v560
        %v585 = vmul.f32 %v577, %v562
        %v586 = vmul.f32 %v578, %v564
        %v587 = vmul.f32 %v579, %v566
        %v588 = vpack.c.bf16 %v582, %v580
        %v589 = vpack.c.bf16 %v583, %v581
        %v590 = vpack.c.bf16 %v586, %v584
        %v591 = vpack.c.bf16 %v587, %v585
        %v592 = vld [vmem:[%s7] sm:$0xf]
        %v593 = vld [vmem:[%s7 + $0x4] sm:$0xf]
        %v594 = vld [vmem:[%s7 + $0x8] sm:$0xf]
        %v595 = vld [vmem:[%s7 + $0xc] sm:$0xf]
        %v596 = vld [vmem:[%s7 + $0x10] sm:$0xf]
        %v597 = vld [vmem:[%s7 + $0x14] sm:$0xf]
        %v598 = vld [vmem:[%s7 + $0x18] sm:$0xf]
        %v599 = vld [vmem:[%s7 + $0x1c] sm:$0xf]
        %v600 = vld [vmem:[%s7 + $0x20] sm:$0xf]
        %v601 = vld [vmem:[%s7 + $0x24] sm:$0xf]
        %v602 = vld [vmem:[%s7 + $0x28] sm:$0xf]
        %v603 = vld [vmem:[%s7 + $0x2c] sm:$0xf]
        %v604 = vld [vmem:[%s7 + $0x30] sm:$0xf]
        %v605 = vld [vmem:[%s7 + $0x34] sm:$0xf]
        %v606 = vld [vmem:[%s7 + $0x38] sm:$0xf]
        %v607 = vld [vmem:[%s7 + $0x3c] sm:$0xf]
        %v608 = vld [vmem:[%s7 + $0x40] sm:$0xf]
        %v609 = vld [vmem:[%s7 + $0x44] sm:$0xf]
        %v610 = vld [vmem:[%s7 + $0x48] sm:$0xf]
        %v611 = vld [vmem:[%s7 + $0x4c] sm:$0xf]
        %v612 = vld [vmem:[%s7 + $0x50] sm:$0xf]
        %v613 = vld [vmem:[%s7 + $0x54] sm:$0xf]
        %v614 = vld [vmem:[%s7 + $0x58] sm:$0xf]
        %v615 = vld [vmem:[%s7 + $0x5c] sm:$0xf]
        %v616 = vld [vmem:[%s7 + $0x60] sm:$0xf]
        %v617 = vld [vmem:[%s7 + $0x64] sm:$0xf]
        %v618 = vld [vmem:[%s7 + $0x68] sm:$0xf]
        %v619 = vld [vmem:[%s7 + $0x6c] sm:$0xf]
        %v620 = vld [vmem:[%s7 + $0x70] sm:$0xf]
        %v621 = vld [vmem:[%s7 + $0x74] sm:$0xf]
        %v622 = vld [vmem:[%s7 + $0x78] sm:$0xf]
        %v623 = vld [vmem:[%s7 + $0x7c] sm:$0xf]
        %v656 = vunpack.c.l.b16 %v592
        %v657 = vunpack.c.l.b16 %v593
        %v658 = vunpack.c.l.b16 %v594
        %v659 = vunpack.c.l.b16 %v595
        %v660 = vunpack.c.l.b16 %v596
        %v661 = vunpack.c.l.b16 %v597
        %v662 = vunpack.c.l.b16 %v598
        %v663 = vunpack.c.l.b16 %v599
        %v664 = vunpack.c.l.b16 %v600
        %v665 = vunpack.c.l.b16 %v601
        %v666 = vunpack.c.l.b16 %v602
        %v667 = vunpack.c.l.b16 %v603
        %v668 = vunpack.c.l.b16 %v604
        %v669 = vunpack.c.l.b16 %v605
        %v670 = vunpack.c.l.b16 %v606
        %v671 = vunpack.c.l.b16 %v607
        %v672 = vunpack.c.l.b16 %v608
        %v673 = vunpack.c.l.b16 %v609
        %v674 = vunpack.c.l.b16 %v610
        %v675 = vunpack.c.l.b16 %v611
        %v676 = vunpack.c.l.b16 %v612
        %v677 = vunpack.c.l.b16 %v613
        %v678 = vunpack.c.l.b16 %v614
        %v679 = vunpack.c.l.b16 %v615
        %v680 = vunpack.c.l.b16 %v616
        %v681 = vunpack.c.l.b16 %v617
        %v682 = vunpack.c.l.b16 %v618
        %v683 = vunpack.c.l.b16 %v619
        %v684 = vunpack.c.l.b16 %v620
        %v685 = vunpack.c.l.b16 %v621
        %v686 = vunpack.c.l.b16 %v622
        %v687 = vunpack.c.l.b16 %v623
        %v688 = vpack.c.b16 %v657, %v656
        %v689 = vpack.c.b16 %v659, %v658
        %v690 = vpack.c.b16 %v661, %v660
        %v691 = vpack.c.b16 %v663, %v662
        %v692 = vpack.c.b16 %v665, %v664
        %v693 = vpack.c.b16 %v667, %v666
        %v694 = vpack.c.b16 %v669, %v668
        %v695 = vpack.c.b16 %v671, %v670
        %v696 = vpack.c.b16 %v673, %v672
        %v697 = vpack.c.b16 %v675, %v674
        %v698 = vpack.c.b16 %v677, %v676
        %v699 = vpack.c.b16 %v679, %v678
        %v700 = vpack.c.b16 %v681, %v680
        %v701 = vpack.c.b16 %v683, %v682
        %v702 = vpack.c.b16 %v685, %v684
        %v703 = vpack.c.b16 %v687, %v686
        %720 = vmatprep.subr.bf16.mxu0 0
        %721 = vmatpush1.bf16.msra.mxu0 %v695
        %722 = vmatprep.subr.bf16.mxu0 0
        %723 = vmatpush1.bf16.msra.mxu0 %v694
        %724 = vmatprep.subr.bf16.mxu0 0
        %725 = vmatpush1.bf16.msra.mxu0 %v693
        %726 = vmatprep.subr.bf16.mxu0 0
        %727 = vmatpush1.bf16.msra.mxu0 %v692
        %728 = vmatprep.subr.bf16.mxu0 0
        %729 = vmatpush1.bf16.msra.mxu0 %v691
        %730 = vmatprep.subr.bf16.mxu0 0
        %731 = vmatpush1.bf16.msra.mxu0 %v690
        %732 = vmatprep.subr.bf16.mxu0 0
        %733 = vmatpush1.bf16.msra.mxu0 %v689
        %734 = vmatprep.subr.bf16.mxu0 0
        %735 = vmatpush1.bf16.msra.mxu0 %v688
        %736 = vmatprep.subr.bf16.mxu0 0
        %737 = vmatpush2.bf16.msra.mxu0 %v703
        %738 = vmatprep.subr.bf16.mxu0 0
        %739 = vmatpush2.bf16.msra.mxu0 %v702
        %740 = vmatprep.subr.bf16.mxu0 0
        %741 = vmatpush2.bf16.msra.mxu0 %v701
        %742 = vmatprep.subr.bf16.mxu0 0
        %743 = vmatpush2.bf16.msra.mxu0 %v700
        %744 = vmatprep.subr.bf16.mxu0 0
        %745 = vmatpush2.bf16.msra.mxu0 %v699
        %746 = vmatprep.subr.bf16.mxu0 0
        %747 = vmatpush2.bf16.msra.mxu0 %v698
        %748 = vmatprep.subr.bf16.mxu0 0
        %749 = vmatpush2.bf16.msra.mxu0 %v697
        %750 = vmatprep.subr.bf16.mxu0 0
        %751 = vmatpush2.bf16.msra.mxu0 %v696
        %752 = vmatprep.mubr.bf16.mxu0 %v589
        %753 = vmatmul.mubr.bf16.gmra.mxu0 %v588
        %v754 = vpop.f32.mrf.mxu0
        %v755 = vadd.f32 0.0, %v754
        %v756 = vpop.f32.mrf.mxu0
        %v757 = vpop.f32.mrf.mxu0
        %v758 = vadd.f32 0.0, %v757
        %v759 = vpop.f32.mrf.mxu0
        %760 = vmatprep.mubr.bf16.mxu0 %v591
        %761 = vmatmul.mubr.bf16.gmra.mxu0 %v590
        %v762 = vpop.f32.mrf.mxu0
        %v763 = vadd.f32 0.0, %v762
        %v764 = vpop.f32.mrf.mxu0
        %v765 = vpop.f32.mrf.mxu0
        %v766 = vadd.f32 0.0, %v765
        %v767 = vpop.f32.mrf.mxu0
        %768 = vdwg.mxu0
        %v769 = vld [vmem:[%s459] sm:$0x3]
        %v770 = vld [vmem:[%s459 + $0x2] sm:$0x3]
        %v771 = vld [vmem:[%s459 + $0x4] sm:$0x3]
        %v772 = vld [vmem:[%s459 + $0x6] sm:$0x3]
        %vm773 = vnez %v769
        %vm774 = vnez %v770
        %vm775 = vnez %v771
        %vm776 = vnez %v772
        %v777 = vsel %vm773, 16843009, 0
        %v778 = vsel %vm774, 16843009, 0
        %v779 = vsel %vm775, 16843009, 0
        %v780 = vsel %vm776, 16843009, 0
        %v781 = vunpack.c.0.s8 %v777
        %v782 = vunpack.c.0.s8 %v778
        %v783 = vunpack.c.0.s8 %v779
        %v784 = vunpack.c.0.s8 %v780
        %vm785 = vcmp.ne.s32.totalorder %v781, 0
        %vm786 = vcmp.ne.s32.totalorder %v782, 0
        %vm787 = vcmp.ne.s32.totalorder %v783, 0
        %vm788 = vcmp.ne.s32.totalorder %v784, 0
        %v789 = vsel %vm785, -1e+09, %v755
        %v790 = vsel %vm786, -1e+09, %v758
        %v791 = vsel %vm787, -1e+09, %v763
        %v792 = vsel %vm788, -1e+09, %v766
        %vm793 = vcmask 64512
        %v794 = vsel %vm793, %v789, -inf
        %795 = vmax.xlane.f32.xlu0 %v794
        %v796 = vpop.xlane.xlu0 %795
        %v797 = vsel %vm793, %v790, -inf
        %798 = vmax.xlane.f32.xlu0 %v797
        %v799 = vpop.xlane.xlu0 %798
        %v800 = vsel %vm793, %v791, -inf
        %801 = vmax.xlane.f32.xlu0 %v800
        %v802 = vpop.xlane.xlu0 %801
        %v803 = vsel %vm793, %v792, -inf
        %804 = vmax.xlane.f32.xlu0 %v803
        %v805 = vpop.xlane.xlu0 %804
        %v806 = vsub.f32 %v789, %v796
        %v807 = vsub.f32 %v790, %v799
        %v808 = vsub.f32 %v791, %v802
        %v809 = vsub.f32 %v792, %v805
        %v810 = vmul.f32 %v806, 1.442695
        %v811 = vpow.pop %v810
        %v812 = vmul.f32 %v807, 1.442695
        %v813 = vpow.pop %v812
        %v814 = vmul.f32 %v808, 1.442695
        %v815 = vpow.pop %v814
        %v816 = vmul.f32 %v809, 1.442695
        %v817 = vpow.pop %v816
        %v818 = vsel %vm793, %v811, 0.0
        %819 = vadd.xlane.f32.xlu0 %v818
        %v820 = vpop.xlane.xlu0 %819
        %v821 = vsel %vm793, %v813, 0.0
        %822 = vadd.xlane.f32.xlu0 %v821
        %v823 = vpop.xlane.xlu0 %822
        %v824 = vsel %vm793, %v815, 0.0
        %825 = vadd.xlane.f32.xlu0 %v824
        %v826 = vpop.xlane.xlu0 %825
        %v827 = vsel %vm793, %v817, 0.0
        %828 = vadd.xlane.f32.xlu0 %v827
        %v829 = vpop.xlane.xlu0 %828
        %v830 = vrcp.pop %v820
        %v831 = vrcp.pop %v823
        %v832 = vrcp.pop %v826
        %v833 = vrcp.pop %v829
        %v834 = vmul.f32 %v811, %v830
        %v835 = vmul.f32 %v813, %v831
        %v836 = vmul.f32 %v815, %v832
        %v837 = vmul.f32 %v817, %v833
        %v838 = vld [vmem:[%s384] sm:$0xff]
        %v839 = vld [vmem:[%s384 + $0x8] sm:$0xff]
        %v840 = vld [vmem:[%s384 + $0x10] sm:$0xff]
        %v841 = vld [vmem:[%s384 + $0x18] sm:$0xff]
        %v842 = vld [vmem:[%s5] sm:$0xff]
        %v843 = vld [vmem:[%s5 + $0x8] sm:$0xff]
        %v844 = vld [vmem:[%s5 + $0x10] sm:$0xff]
        %v845 = vld [vmem:[%s5 + $0x18] sm:$0xff]
        %v846 = vld [vmem:[%s5 + $0x20] sm:$0xff]
        %v847 = vld [vmem:[%s5 + $0x28] sm:$0xff]
        %v848 = vld [vmem:[%s5 + $0x30] sm:$0xff]
        %v849 = vld [vmem:[%s5 + $0x38] sm:$0xff]
        %v850 = vld [vmem:[%s5 + $0x40] sm:$0xff]
        %v851 = vld [vmem:[%s5 + $0x48] sm:$0xff]
        %v852 = vld [vmem:[%s5 + $0x50] sm:$0xff]
        %v853 = vld [vmem:[%s5 + $0x58] sm:$0xff]
        %v854 = vld [vmem:[%s5 + $0x60] sm:$0xff]
        %v855 = vld [vmem:[%s5 + $0x68] sm:$0xff]
        %v856 = vld [vmem:[%s5 + $0x70] sm:$0xff]
        %v857 = vld [vmem:[%s5 + $0x78] sm:$0xff]
        %v858 = vld [vmem:[%s5 + $0x80] sm:$0xff]
        %v859 = vld [vmem:[%s5 + $0x88] sm:$0xff]
        %v860 = vld [vmem:[%s5 + $0x90] sm:$0xff]
        %v861 = vld [vmem:[%s5 + $0x98] sm:$0xff]
        %v862 = vld [vmem:[%s5 + $0xa0] sm:$0xff]
        %v863 = vld [vmem:[%s5 + $0xa8] sm:$0xff]
        %v864 = vld [vmem:[%s5 + $0xb0] sm:$0xff]
        %v865 = vld [vmem:[%s5 + $0xb8] sm:$0xff]
        %v866 = vld [vmem:[%s5 + $0xc0] sm:$0xff]
        %v867 = vld [vmem:[%s5 + $0xc8] sm:$0xff]
        %v868 = vld [vmem:[%s5 + $0xd0] sm:$0xff]
        %v869 = vld [vmem:[%s5 + $0xd8] sm:$0xff]
        %v870 = vld [vmem:[%s5 + $0xe0] sm:$0xff]
        %v871 = vld [vmem:[%s5 + $0xe8] sm:$0xff]
        %v872 = vld [vmem:[%s5 + $0xf0] sm:$0xff]
        %v873 = vld [vmem:[%s5 + $0xf8] sm:$0xff]
        %v874 = vld [vmem:[%s6] sm:$0x3]
        %v876 = vlaneseq
        %v877 = vshrl.u32 %v876, 7
        %v878 = vsub.s32 0, %v877
        %v879 = vrot.slane %v874, %v878
        %v880 = vlaneseq
        %v881 = vshrl.u32 %v880, 7
        %v882 = vsub.s32 1, %v881
        %v883 = vrot.slane %v874, %v882
        %v890 = vunpack.c.l.b16 %v838
        %v891 = vunpack.c.h.b16 %v838
        %v892 = vunpack.c.l.b16 %v839
        %v893 = vunpack.c.h.b16 %v839
        %v894 = vunpack.c.l.b16 %v840
        %v895 = vunpack.c.h.b16 %v840
        %v896 = vunpack.c.l.b16 %v841
        %v897 = vunpack.c.h.b16 %v841
        %v898 = vpack.c.b16 %v892, %v890
        %v899 = vpack.c.b16 %v893, %v891
        %v900 = vpack.c.b16 %v896, %v894
        %v901 = vpack.c.b16 %v897, %v895
        %v938 = vunpack.c.l.b16 %v842
        %v939 = vunpack.c.h.b16 %v842
        %v940 = vunpack.c.l.b16 %v843
        %v941 = vunpack.c.h.b16 %v843
        %v942 = vunpack.c.l.b16 %v844
        %v943 = vunpack.c.h.b16 %v844
        %v944 = vunpack.c.l.b16 %v845
        %v945 = vunpack.c.h.b16 %v845
        %v946 = vunpack.c.l.b16 %v846
        %v947 = vunpack.c.h.b16 %v846
        %v948 = vunpack.c.l.b16 %v847
        %v949 = vunpack.c.h.b16 %v847
        %v950 = vunpack.c.l.b16 %v848
        %v951 = vunpack.c.h.b16 %v848
        %v952 = vunpack.c.l.b16 %v849
        %v953 = vunpack.c.h.b16 %v849
        %v954 = vunpack.c.l.b16 %v850
        %v955 = vunpack.c.h.b16 %v850
        %v956 = vunpack.c.l.b16 %v851
        %v957 = vunpack.c.h.b16 %v851
        %v958 = vunpack.c.l.b16 %v852
        %v959 = vunpack.c.h.b16 %v852
        %v960 = vunpack.c.l.b16 %v853
        %v961 = vunpack.c.h.b16 %v853
        %v962 = vunpack.c.l.b16 %v854
        %v963 = vunpack.c.h.b16 %v854
        %v964 = vunpack.c.l.b16 %v855
        %v965 = vunpack.c.h.b16 %v855
        %v966 = vunpack.c.l.b16 %v856
        %v967 = vunpack.c.h.b16 %v856
        %v968 = vunpack.c.l.b16 %v857
        %v969 = vunpack.c.h.b16 %v857
        %v970 = vunpack.c.l.b16 %v858
        %v971 = vunpack.c.h.b16 %v858
        %v972 = vunpack.c.l.b16 %v859
        %v973 = vunpack.c.h.b16 %v859
        %v974 = vunpack.c.l.b16 %v860
        %v975 = vunpack.c.h.b16 %v860
        %v976 = vunpack.c.l.b16 %v861
        %v977 = vunpack.c.h.b16 %v861
        %v978 = vunpack.c.l.b16 %v862
        %v979 = vunpack.c.h.b16 %v862
        %v980 = vunpack.c.l.b16 %v863
        %v981 = vunpack.c.h.b16 %v863
        %v982 = vunpack.c.l.b16 %v864
        %v983 = vunpack.c.h.b16 %v864
        %v984 = vunpack.c.l.b16 %v865
        %v985 = vunpack.c.h.b16 %v865
        %v986 = vunpack.c.l.b16 %v866
        %v987 = vunpack.c.h.b16 %v866
        %v988 = vunpack.c.l.b16 %v867
        %v989 = vunpack.c.h.b16 %v867
        %v990 = vunpack.c.l.b16 %v868
        %v991 = vunpack.c.h.b16 %v868
        %v992 = vunpack.c.l.b16 %v869
        %v993 = vunpack.c.h.b16 %v869
        %v994 = vunpack.c.l.b16 %v870
        %v995 = vunpack.c.h.b16 %v870
        %v996 = vunpack.c.l.b16 %v871
        %v997 = vunpack.c.h.b16 %v871
        %v998 = vunpack.c.l.b16 %v872
        %v999 = vunpack.c.h.b16 %v872
        %v1000 = vunpack.c.l.b16 %v873
        %v1001 = vunpack.c.h.b16 %v873
        %v1002 = vpack.c.b16 %v940, %v938
        %v1003 = vpack.c.b16 %v941, %v939
        %v1004 = vpack.c.b16 %v944, %v942
        %v1005 = vpack.c.b16 %v945, %v943
        %v1006 = vpack.c.b16 %v948, %v946
        %v1007 = vpack.c.b16 %v949, %v947
        %v1008 = vpack.c.b16 %v952, %v950
        %v1009 = vpack.c.b16 %v953, %v951
        %v1010 = vpack.c.b16 %v956, %v954
        %v1011 = vpack.c.b16 %v957, %v955
        %v1012 = vpack.c.b16 %v960, %v958
        %v1013 = vpack.c.b16 %v961, %v959
        %v1014 = vpack.c.b16 %v964, %v962
        %v1015 = vpack.c.b16 %v965, %v963
        %v1016 = vpack.c.b16 %v968, %v966
        %v1017 = vpack.c.b16 %v969, %v967
        %v1018 = vpack.c.b16 %v972, %v970
        %v1019 = vpack.c.b16 %v973, %v971
        %v1020 = vpack.c.b16 %v976, %v974
        %v1021 = vpack.c.b16 %v977, %v975
        %v1022 = vpack.c.b16 %v980, %v978
        %v1023 = vpack.c.b16 %v981, %v979
        %v1024 = vpack.c.b16 %v984, %v982
        %v1025 = vpack.c.b16 %v985, %v983
        %v1026 = vpack.c.b16 %v988, %v986
        %v1027 = vpack.c.b16 %v989, %v987
        %v1028 = vpack.c.b16 %v992, %v990
        %v1029 = vpack.c.b16 %v993, %v991
        %v1030 = vpack.c.b16 %v996, %v994
        %v1031 = vpack.c.b16 %v997, %v995
        %v1032 = vpack.c.b16 %v1000, %v998
        %v1033 = vpack.c.b16 %v1001, %v999
        %1066 = vmatprep.subr.bf16.mxu0 %v1017
        %1067 = vmatpush1.bf16.msra.mxu0 %v1016
        %1068 = vmatprep.subr.bf16.mxu0 %v1015
        %1069 = vmatpush1.bf16.msra.mxu0 %v1014
        %1070 = vmatprep.subr.bf16.mxu0 %v1013
        %1071 = vmatpush1.bf16.msra.mxu0 %v1012
        %1072 = vmatprep.subr.bf16.mxu0 %v1011
        %1073 = vmatpush1.bf16.msra.mxu0 %v1010
        %1074 = vmatprep.subr.bf16.mxu0 %v1009
        %1075 = vmatpush1.bf16.msra.mxu0 %v1008
        %1076 = vmatprep.subr.bf16.mxu0 %v1007
        %1077 = vmatpush1.bf16.msra.mxu0 %v1006
        %1078 = vmatprep.subr.bf16.mxu0 %v1005
        %1079 = vmatpush1.bf16.msra.mxu0 %v1004
        %1080 = vmatprep.subr.bf16.mxu0 %v1003
        %1081 = vmatpush1.bf16.msra.mxu0 %v1002
        %1082 = vmatprep.subr.bf16.mxu0 %v1033
        %1083 = vmatpush2.bf16.msra.mxu0 %v1032
        %1084 = vmatprep.subr.bf16.mxu0 %v1031
        %1085 = vmatpush2.bf16.msra.mxu0 %v1030
        %1086 = vmatprep.subr.bf16.mxu0 %v1029
        %1087 = vmatpush2.bf16.msra.mxu0 %v1028
        %1088 = vmatprep.subr.bf16.mxu0 %v1027
        %1089 = vmatpush2.bf16.msra.mxu0 %v1026
        %1090 = vmatprep.subr.bf16.mxu0 %v1025
        %1091 = vmatpush2.bf16.msra.mxu0 %v1024
        %1092 = vmatprep.subr.bf16.mxu0 %v1023
        %1093 = vmatpush2.bf16.msra.mxu0 %v1022
        %1094 = vmatprep.subr.bf16.mxu0 %v1021
        %1095 = vmatpush2.bf16.msra.mxu0 %v1020
        %1096 = vmatprep.subr.bf16.mxu0 %v1019
        %1097 = vmatpush2.bf16.msra.mxu0 %v1018
        %1098 = vmatprep.mubr.bf16.mxu0 %v899
        %1099 = vmatmul.mubr.bf16.gmra.mxu0 %v898
        %v1100 = vpop.f32.mrf.mxu0
        %v1101 = vadd.f32 %v879, %v1100
        %v1102 = vpop.f32.mrf.mxu0
        %v1103 = vadd.f32 %v883, %v1102
        %v1104 = vpop.f32.mrf.mxu0
        %v1105 = vadd.f32 %v879, %v1104
        %v1106 = vpop.f32.mrf.mxu0
        %v1107 = vadd.f32 %v883, %v1106
        %1108 = vmatprep.mubr.bf16.mxu0 %v901
        %1109 = vmatmul.mubr.bf16.gmra.mxu0 %v900
        %v1110 = vpop.f32.mrf.mxu0
        %v1111 = vadd.f32 %v879, %v1110
        %v1112 = vpop.f32.mrf.mxu0
        %v1113 = vadd.f32 %v883, %v1112
        %v1114 = vpop.f32.mrf.mxu0
        %v1115 = vadd.f32 %v879, %v1114
        %v1116 = vpop.f32.mrf.mxu0
        %v1117 = vadd.f32 %v883, %v1116
        %1118 = vdwg.mxu0
        %v1119 = vtanh.pop %v1101
        %v1120 = vtanh.pop %v1103
        %v1121 = vtanh.pop %v1105
        %v1122 = vtanh.pop %v1107
        %v1123 = vtanh.pop %v1111
        %v1124 = vtanh.pop %v1113
        %v1125 = vtanh.pop %v1115
        %v1126 = vtanh.pop %v1117
        %v1127 = vld [vmem:[%s8] sm:$0xff]
        %v1128 = vld [vmem:[%s8 + $0x8] sm:$0xff]
        %v1130 = vsel %vm793, %v834, 0
        %v1133 = vsel %vm793, %v835, 0
        %v1136 = vsel %vm793, %v836, 0
        %v1139 = vsel %vm793, %v837, 0
        %1141 = vmatprep.subr.mxu0 0.0
        %1142 = vmatpush1.msra.mxu0 0.0
        %1143 = vmatprep.subr.mxu0 0.0
        %1144 = vmatpush1.msra.mxu0 0.0
        %1145 = vmatprep.subr.mxu0 0.0
        %1146 = vmatpush1.msra.mxu0 0.0
        %1147 = vmatprep.subr.mxu0 0.0
        %1148 = vmatpush1.msra.mxu0 0.0
        %1149 = vmatprep.subr.mxu0 0.0
        %1150 = vmatpush1.msra.mxu0 0.0
        %1151 = vmatprep.subr.mxu0 0.0
        %1152 = vmatpush1.msra.mxu0 0.0
        %1153 = vmatprep.subr.mxu0 0.0
        %1154 = vmatpush1.msra.mxu0 0.0
        %1155 = vmatprep.subr.mxu0 0.0
        %1156 = vmatpush1.msra.mxu0 0.0
        %1157 = vmatprep.subr.mxu0 0.0
        %1158 = vmatpush1.msra.mxu0 0.0
        %1159 = vmatprep.subr.mxu0 0.0
        %1160 = vmatpush1.msra.mxu0 0.0
        %1161 = vmatprep.subr.mxu0 0.0
        %1162 = vmatpush1.msra.mxu0 0.0
        %1163 = vmatprep.subr.mxu0 0.0
        %1164 = vmatpush1.msra.mxu0 0.0
        %1165 = vmatprep.subr.mxu0 0.0
        %1166 = vmatpush1.msra.mxu0 0.0
        %1167 = vmatprep.subr.mxu0 0.0
        %1168 = vmatpush1.msra.mxu0 0.0
        %1169 = vmatprep.subr.mxu0 0.0
        %1170 = vmatpush1.msra.mxu0 0.0
        %1171 = vmatprep.subr.mxu0 %v1128
        %1172 = vmatpush1.msra.mxu0 %v1127
        %1173 = vmatprep.subr.mxu0 0.0
        %1174 = vmatpush2.msra.mxu0 0.0
        %1175 = vmatprep.subr.mxu0 0.0
        %1176 = vmatpush2.msra.mxu0 0.0
        %1177 = vmatprep.subr.mxu0 0.0
        %1178 = vmatpush2.msra.mxu0 0.0
        %1179 = vmatprep.subr.mxu0 0.0
        %1180 = vmatpush2.msra.mxu0 0.0
        %1181 = vmatprep.subr.mxu0 0.0
        %1182 = vmatpush2.msra.mxu0 0.0
        %1183 = vmatprep.subr.mxu0 0.0
        %1184 = vmatpush2.msra.mxu0 0.0
        %1185 = vmatprep.subr.mxu0 0.0
        %1186 = vmatpush2.msra.mxu0 0.0
        %1187 = vmatprep.subr.mxu0 0.0
        %1188 = vmatpush2.msra.mxu0 0.0
        %1189 = vmatprep.subr.mxu0 0.0
        %1190 = vmatpush2.msra.mxu0 0.0
        %1191 = vmatprep.subr.mxu0 0.0
        %1192 = vmatpush2.msra.mxu0 0.0
        %1193 = vmatprep.subr.mxu0 0.0
        %1194 = vmatpush2.msra.mxu0 0.0
        %1195 = vmatprep.subr.mxu0 0.0
        %1196 = vmatpush2.msra.mxu0 0.0
        %1197 = vmatprep.subr.mxu0 0.0
        %1198 = vmatpush2.msra.mxu0 0.0
        %1199 = vmatprep.subr.mxu0 0.0
        %1200 = vmatpush2.msra.mxu0 0.0
        %1201 = vmatprep.subr.mxu0 0.0
        %1202 = vmatpush2.msra.mxu0 0.0
        %1203 = vmatprep.subr.mxu0 0.0
        %1204 = vmatpush2.msra.mxu0 0.0
        %1205 = vmatprep.mubr.f32.mxu0 0.0
        %1206 = vmatmul.mubr.f32.gmra.mxu0 %v1130
        %v1207 = vpop.f32.mrf.mxu0
        %v1208 = vadd.f32 0.0, %v1207
        %v1209 = vpop.f32.mrf.mxu0
        %v1210 = vadd.f32 0.0, %v1209
        %1211 = vmatprep.mubr.f32.mxu0 0.0
        %1212 = vmatmul.mubr.f32.gmra.mxu0 %v1133
        %v1213 = vpop.f32.mrf.mxu0
        %v1214 = vadd.f32 0.0, %v1213
        %v1215 = vpop.f32.mrf.mxu0
        %v1216 = vadd.f32 0.0, %v1215
        %1217 = vmatprep.mubr.f32.mxu0 0.0
        %1218 = vmatmul.mubr.f32.gmra.mxu0 %v1136
        %v1219 = vpop.f32.mrf.mxu0
        %v1220 = vadd.f32 0.0, %v1219
        %v1221 = vpop.f32.mrf.mxu0
        %v1222 = vadd.f32 0.0, %v1221
        %1223 = vmatprep.mubr.f32.mxu0 0.0
        %1224 = vmatmul.mubr.f32.gmra.mxu0 %v1139
        %v1225 = vpop.f32.mrf.mxu0
        %v1226 = vadd.f32 0.0, %v1225
        %v1227 = vpop.f32.mrf.mxu0
        %v1228 = vadd.f32 0.0, %v1227
        %1229 = vdwg.mxu0
        %v1230 = vmul.f32 %v1208, %v1119
        %v1231 = vmul.f32 %v1210, %v1120
        %v1232 = vmul.f32 %v1214, %v1121
        %v1233 = vmul.f32 %v1216, %v1122
        %v1234 = vmul.f32 %v1220, %v1123
        %v1235 = vmul.f32 %v1222, %v1124
        %v1236 = vmul.f32 %v1226, %v1125
        %v1237 = vmul.f32 %v1228, %v1126
        %v1238 = vpack.c.bf16 %v1232, %v1230
        %v1239 = vpack.c.bf16 %v1233, %v1231
        %v1240 = vpack.c.bf16 %v1236, %v1234
        %v1241 = vpack.c.bf16 %v1237, %v1235
        %v1242 = vld [vmem:[%s9] sm:$0xf]
        %v1243 = vld [vmem:[%s9 + $0x4] sm:$0xf]
        %v1244 = vld [vmem:[%s9 + $0x8] sm:$0xf]
        %v1245 = vld [vmem:[%s9 + $0xc] sm:$0xf]
        %v1246 = vld [vmem:[%s9 + $0x10] sm:$0xf]
        %v1247 = vld [vmem:[%s9 + $0x14] sm:$0xf]
        %v1248 = vld [vmem:[%s9 + $0x18] sm:$0xf]
        %v1249 = vld [vmem:[%s9 + $0x1c] sm:$0xf]
        %v1250 = vld [vmem:[%s9 + $0x20] sm:$0xf]
        %v1251 = vld [vmem:[%s9 + $0x24] sm:$0xf]
        %v1252 = vld [vmem:[%s9 + $0x28] sm:$0xf]
        %v1253 = vld [vmem:[%s9 + $0x2c] sm:$0xf]
        %v1254 = vld [vmem:[%s9 + $0x30] sm:$0xf]
        %v1255 = vld [vmem:[%s9 + $0x34] sm:$0xf]
        %v1256 = vld [vmem:[%s9 + $0x38] sm:$0xf]
        %v1257 = vld [vmem:[%s9 + $0x3c] sm:$0xf]
        %v1258 = vld [vmem:[%s9 + $0x40] sm:$0xf]
        %v1259 = vld [vmem:[%s9 + $0x44] sm:$0xf]
        %v1260 = vld [vmem:[%s9 + $0x48] sm:$0xf]
        %v1261 = vld [vmem:[%s9 + $0x4c] sm:$0xf]
        %v1262 = vld [vmem:[%s9 + $0x50] sm:$0xf]
        %v1263 = vld [vmem:[%s9 + $0x54] sm:$0xf]
        %v1264 = vld [vmem:[%s9 + $0x58] sm:$0xf]
        %v1265 = vld [vmem:[%s9 + $0x5c] sm:$0xf]
        %v1266 = vld [vmem:[%s9 + $0x60] sm:$0xf]
        %v1267 = vld [vmem:[%s9 + $0x64] sm:$0xf]
        %v1268 = vld [vmem:[%s9 + $0x68] sm:$0xf]
        %v1269 = vld [vmem:[%s9 + $0x6c] sm:$0xf]
        %v1270 = vld [vmem:[%s9 + $0x70] sm:$0xf]
        %v1271 = vld [vmem:[%s9 + $0x74] sm:$0xf]
        %v1272 = vld [vmem:[%s9 + $0x78] sm:$0xf]
        %v1273 = vld [vmem:[%s9 + $0x7c] sm:$0xf]
        %v1306 = vunpack.c.l.b16 %v1242
        %v1307 = vunpack.c.l.b16 %v1243
        %v1308 = vunpack.c.l.b16 %v1244
        %v1309 = vunpack.c.l.b16 %v1245
        %v1310 = vunpack.c.l.b16 %v1246
        %v1311 = vunpack.c.l.b16 %v1247
        %v1312 = vunpack.c.l.b16 %v1248
        %v1313 = vunpack.c.l.b16 %v1249
        %v1314 = vunpack.c.l.b16 %v1250
        %v1315 = vunpack.c.l.b16 %v1251
        %v1316 = vunpack.c.l.b16 %v1252
        %v1317 = vunpack.c.l.b16 %v1253
        %v1318 = vunpack.c.l.b16 %v1254
        %v1319 = vunpack.c.l.b16 %v1255
        %v1320 = vunpack.c.l.b16 %v1256
        %v1321 = vunpack.c.l.b16 %v1257
        %v1322 = vunpack.c.l.b16 %v1258
        %v1323 = vunpack.c.l.b16 %v1259
        %v1324 = vunpack.c.l.b16 %v1260
        %v1325 = vunpack.c.l.b16 %v1261
        %v1326 = vunpack.c.l.b16 %v1262
        %v1327 = vunpack.c.l.b16 %v1263
        %v1328 = vunpack.c.l.b16 %v1264
        %v1329 = vunpack.c.l.b16 %v1265
        %v1330 = vunpack.c.l.b16 %v1266
        %v1331 = vunpack.c.l.b16 %v1267
        %v1332 = vunpack.c.l.b16 %v1268
        %v1333 = vunpack.c.l.b16 %v1269
        %v1334 = vunpack.c.l.b16 %v1270
        %v1335 = vunpack.c.l.b16 %v1271
        %v1336 = vunpack.c.l.b16 %v1272
        %v1337 = vunpack.c.l.b16 %v1273
        %v1338 = vpack.c.b16 %v1307, %v1306
        %v1339 = vpack.c.b16 %v1309, %v1308
        %v1340 = vpack.c.b16 %v1311, %v1310
        %v1341 = vpack.c.b16 %v1313, %v1312
        %v1342 = vpack.c.b16 %v1315, %v1314
        %v1343 = vpack.c.b16 %v1317, %v1316
        %v1344 = vpack.c.b16 %v1319, %v1318
        %v1345 = vpack.c.b16 %v1321, %v1320
        %v1346 = vpack.c.b16 %v1323, %v1322
        %v1347 = vpack.c.b16 %v1325, %v1324
        %v1348 = vpack.c.b16 %v1327, %v1326
        %v1349 = vpack.c.b16 %v1329, %v1328
        %v1350 = vpack.c.b16 %v1331, %v1330
        %v1351 = vpack.c.b16 %v1333, %v1332
        %v1352 = vpack.c.b16 %v1335, %v1334
        %v1353 = vpack.c.b16 %v1337, %v1336
        %1370 = vmatprep.subr.bf16.mxu0 0
        %1371 = vmatpush1.bf16.msra.mxu0 %v1345
        %1372 = vmatprep.subr.bf16.mxu0 0
        %1373 = vmatpush1.bf16.msra.mxu0 %v1344
        %1374 = vmatprep.subr.bf16.mxu0 0
        %1375 = vmatpush1.bf16.msra.mxu0 %v1343
        %1376 = vmatprep.subr.bf16.mxu0 0
        %1377 = vmatpush1.bf16.msra.mxu0 %v1342
        %1378 = vmatprep.subr.bf16.mxu0 0
        %1379 = vmatpush1.bf16.msra.mxu0 %v1341
        %1380 = vmatprep.subr.bf16.mxu0 0
        %1381 = vmatpush1.bf16.msra.mxu0 %v1340
        %1382 = vmatprep.subr.bf16.mxu0 0
        %1383 = vmatpush1.bf16.msra.mxu0 %v1339
        %1384 = vmatprep.subr.bf16.mxu0 0
        %1385 = vmatpush1.bf16.msra.mxu0 %v1338
        %1386 = vmatprep.subr.bf16.mxu0 0
        %1387 = vmatpush2.bf16.msra.mxu0 %v1353
        %1388 = vmatprep.subr.bf16.mxu0 0
        %1389 = vmatpush2.bf16.msra.mxu0 %v1352
        %1390 = vmatprep.subr.bf16.mxu0 0
        %1391 = vmatpush2.bf16.msra.mxu0 %v1351
        %1392 = vmatprep.subr.bf16.mxu0 0
        %1393 = vmatpush2.bf16.msra.mxu0 %v1350
        %1394 = vmatprep.subr.bf16.mxu0 0
        %1395 = vmatpush2.bf16.msra.mxu0 %v1349
        %1396 = vmatprep.subr.bf16.mxu0 0
        %1397 = vmatpush2.bf16.msra.mxu0 %v1348
        %1398 = vmatprep.subr.bf16.mxu0 0
        %1399 = vmatpush2.bf16.msra.mxu0 %v1347
        %1400 = vmatprep.subr.bf16.mxu0 0
        %1401 = vmatpush2.bf16.msra.mxu0 %v1346
        %1402 = vmatprep.mubr.bf16.mxu0 %v1239
        %1403 = vmatmul.mubr.bf16.gmra.mxu0 %v1238
        %v1404 = vpop.f32.mrf.mxu0
        %v1405 = vadd.f32 0.0, %v1404
        %v1406 = vpop.f32.mrf.mxu0
        %v1407 = vpop.f32.mrf.mxu0
        %v1408 = vadd.f32 0.0, %v1407
        %v1409 = vpop.f32.mrf.mxu0
        %1410 = vmatprep.mubr.bf16.mxu0 %v1241
        %1411 = vmatmul.mubr.bf16.gmra.mxu0 %v1240
        %v1412 = vpop.f32.mrf.mxu0
        %v1413 = vadd.f32 0.0, %v1412
        %v1414 = vpop.f32.mrf.mxu0
        %v1415 = vpop.f32.mrf.mxu0
        %v1416 = vadd.f32 0.0, %v1415
        %v1417 = vpop.f32.mrf.mxu0
        %1418 = vdwg.mxu0
        %1419 = vst.msk [vmem:[%s465] sm:$0xff] %vm508, %v1405
        %1420 = vst.msk [vmem:[%s465 + $0x8] sm:$0xff] %vm508, %v1408
        %1421 = vst.msk [vmem:[%s465 + $0x10] sm:$0xff] %vm508, %v1413
        %1422 = vst.msk [vmem:[%s465 + $0x18] sm:$0xff] %vm508, %v1416
        %s1423 = smul.u32 4, %s25
        %p1424 = scmp.lt.s32.totalorder %s1423, 7
        %s1425 = scalar_select %p1424, %s1423, 7
        %s1426 = smul.addr %s1425, 8
        %s1427 = scalar_lea.vmem %s10, %s1426
        // Predicated region
        $region69: #{tpu_custom_call.1} parent=59 // pred_check
          %p1428 = pneg %p273
        $region70: #{tpu_custom_call.1} parent=59 // pred_check_branch
          %1430 = sbr.rel (%p1428) target = $region72
        $region71: #{tpu_custom_call.1} parent=59 // pred_region
          %s1431 = smul.u32 4, %s25
        $region72: #{tpu_custom_call.1} parent=59 // pred_fallthru
          _
      $region60: #{tpu_custom_call.1} parent=5 // pred_fallthru
        _
      %p1432 = scmp.le.s32.totalorder 2, %s20
      // Predicated region
      $region73: #{tpu_custom_call.1} parent=5 // pred_check
        %p1433 = pneg %p1432
      $region74: #{tpu_custom_call.1} parent=5 // pred_check_branch
        %1435 = sbr.rel (%p1433) target = $region76
      $region75: #{tpu_custom_call.1} parent=5 // pred_region
        %s1436 = ssub.s32 %s20, 2
        // Predicated region
        $region77: #{tpu_custom_call.1} parent=75 // pred_check
          %p1437 = pneg %p279
        $region78: #{tpu_custom_call.1} parent=75 // pred_check_branch
          %1439 = sbr.rel (%p1437) target = $region80
        $region79: #{tpu_custom_call.1} parent=75 // pred_region
          %s1440 = smul.u32 4, %s26
          %p1441 = scmp.lt.s32.totalorder %s1440, 7
          %s1442 = scalar_select %p1441, %s1440, 7
          %s1443 = smul.addr %s1442, 8
          %s1444 = scalar_lea.vmem %s10, %s1443
        $region80: #{tpu_custom_call.1} parent=75 // pred_fallthru
          _
      $region76: #{tpu_custom_call.1} parent=5 // pred_fallthru
        _
    $region6: #{tpu_custom_call.1} parent=1 // loop_footer
      %s24 = sadd.s32 1, %s20
    $region7: #{tpu_custom_call.1} parent=1 // loop_footer_branch
      %19 = sbr.rel target = $region3
    $region8: #{tpu_custom_call.1} parent=1 // loop_exit
      _
    %1445 = vsyncpa [#allocation3], 1
    %s1446 = scalar_lea.sflag [#allocation3], 1
    %1447 = vsyncpa %s1446, 1
    %1448 = vsyncpa [#allocation5], 1

</llo_original>
